<compile_context>
chip_gen: v5e
topology: v5e:2x2
jax: 0.10.0
libtpu: 0.0.40
codegen_flags: <defaults>
</compile_context>

<pallas_src>
import numpy as np

import jax
import jax.numpy as jnp
from jax import lax
from jax.experimental import pallas as pl
from jax.experimental.pallas import tpu as pltpu


# ----------------------------------------------------------------------------
# Batch tiling
# ----------------------------------------------------------------------------
def _round_up(n, m):
    return ((n + m - 1) // m) * m


def _batch_tiling(batch):
    """Pick (block_rows, padded_batch).

    Block is a multiple of 8, at most 64 images, divides the padded batch, and
    gives >= 2 grid steps once batch >= 16 (v7x megacore).  Padding waste is
    bounded by block_rows - 1 images.
    """
    if batch <= 8:
        bb = 8
    elif batch < 128:
        bb = _round_up((batch + 1) // 2, 8)
    else:
        bb = 64
    return bb, _round_up(batch, bb)


# ----------------------------------------------------------------------------
# The fused kernel: conv1+pool1 -> conv2+pool2 -> fc1 -> fc2 -> fc3
# ----------------------------------------------------------------------------
def _garment_fused_kernel(x_ref, w1e_ref, w1o_ref, b1_ref, w2e_ref, w2o_ref, b2_ref,
                          f1w_ref, f1b_ref, f2w_ref, f2b_ref, f3w_ref, f3b_ref, o_ref):
    """One batch block end-to-end, everything VMEM-resident.

    x_ref : (28, bb, 28)  y-major image block, dims (iy, b, ix)
    w1e/o : (140, 72)     banded conv1 weights, lanes = (pool_col px, out_ch c)
    w2e/o : (360, 64)     banded conv2 weights, lanes = (pool_col px2, out_ch c)
    f1w   : (256, 128)    fc1 (input cols permuted to (h, w, c) order, out padded)
    f2w   : (128, 128)    fc2 (padded)
    f3w   : (128, 10)     fc3 (input rows padded)
    o_ref : (bb, 10)      logits
    """
    bb = x_ref.shape[1]
    xk = x_ref[...]                                                 # (28, bb, 28)

    # ---- conv1 (5x5, 1->6) + bias + ReLU + 2x2 maxpool --------------------
    # Gather the 5 dy-shifted row slabs into lanes (contiguous major-dim slices
    # only), then two banded matmuls give the even/odd pool-column conv outputs.
    x2d = jnp.concatenate([xk[dy:dy + 24] for dy in range(5)],
                          axis=-1).reshape(24 * bb, 140)            # rows (oy, b)
    y1 = jnp.maximum(
        jnp.dot(x2d, w1e_ref[...], preferred_element_type=jnp.float32),
        jnp.dot(x2d, w1o_ref[...], preferred_element_type=jnp.float32),
    ) + b1_ref[...]                                                 # (24*bb, 72)
    y1 = y1.reshape(12, 2 * bb, 72)                                 # (py, oy-parity*b, lanes)
    a1 = jnp.maximum(jnp.maximum(y1[:, :bb], y1[:, bb:]), 0.0)      # (12, bb, 72)

    # ---- conv2 (5x5, 6->16) + bias + ReLU + 2x2 maxpool --------------------
    a2d = jnp.concatenate([a1[dy:dy + 8] for dy in range(5)],
                          axis=-1).reshape(8 * bb, 360)             # rows (qy, b)
    y2 = jnp.maximum(
        jnp.dot(a2d, w2e_ref[...], preferred_element_type=jnp.float32),
        jnp.dot(a2d, w2o_ref[...], preferred_element_type=jnp.float32),
    ) + b2_ref[...]                                                 # (8*bb, 64)
    y2 = y2.reshape(4, 2 * bb, 64)
    a2 = jnp.maximum(jnp.maximum(y2[:, :bb], y2[:, bb:]), 0.0)      # (4, bb, 64)

    # ---- flatten to (bb, 256) in (h, w, c) order (fc1 cols pre-permuted) ----
    feats = jnp.concatenate([a2[0], a2[1], a2[2], a2[3]], axis=-1)  # (bb, 256)

    # ---- fc1+ReLU -> fc2+ReLU -> fc3 ---------------------------------------
    h = jnp.maximum(
        jnp.dot(feats, f1w_ref[...], preferred_element_type=jnp.float32) + f1b_ref[...], 0.0)
    h = jnp.maximum(
        jnp.dot(h, f2w_ref[...], preferred_element_type=jnp.float32) + f2b_ref[...], 0.0)
    o_ref[...] = jnp.dot(h, f3w_ref[...], preferred_element_type=jnp.float32) + f3b_ref[...]


def _fused_forward(x_t, prep, bb):
    """x_t: (28, B_pad, 28) y-major images; returns (B_pad, 10) logits."""
    b_pad = x_t.shape[1]
    const = lambda i: (0, 0)
    return pl.pallas_call(
        _garment_fused_kernel,
        out_shape=jax.ShapeDtypeStruct((b_pad, 10), jnp.float32),
        grid=(b_pad // bb,),
        in_specs=[
            pl.BlockSpec((28, bb, 28), lambda i: (0, i, 0)),
            pl.BlockSpec(prep["w1e"].shape, const),
            pl.BlockSpec(prep["w1o"].shape, const),
            pl.BlockSpec(prep["b1"].shape, const),
            pl.BlockSpec(prep["w2e"].shape, const),
            pl.BlockSpec(prep["w2o"].shape, const),
            pl.BlockSpec(prep["b2"].shape, const),
            pl.BlockSpec(prep["f1w"].shape, const),
            pl.BlockSpec(prep["f1b"].shape, const),
            pl.BlockSpec(prep["f2w"].shape, const),
            pl.BlockSpec(prep["f2b"].shape, const),
            pl.BlockSpec(prep["f3w"].shape, const),
            pl.BlockSpec(prep["f3b"].shape, const),
        ],
        out_specs=pl.BlockSpec((bb, 10), lambda i: (i, 0)),
        compiler_params=pltpu.CompilerParams(dimension_semantics=("parallel",)),
    )(x_t, prep["w1e"], prep["w1o"], prep["b1"], prep["w2e"], prep["w2o"], prep["b2"],
      prep["f1w"], prep["f1b"], prep["f2w"], prep["f2b"], prep["f3w"], prep["f3b"])


# ----------------------------------------------------------------------------
# One-time parameter re-layout (outside the jitted forward)
# ----------------------------------------------------------------------------
def prepare_params(params):
    """Build the banded conv matmul matrices and the padded/permuted FC weights.

    Banded conv matrix for pool-column offset `off` (0=even, 1=odd):
      conv1: W[dy*28 + ix, px*6  + co] = w1[co, 0, dy, ix - (2*px  + off)]
      conv2: W[dy*72 + ix*6 + ci, px2*16 + co] = w2[co, ci, dy, ix - (2*px2 + off)]
    so that (patch-slab @ W) yields the conv output at column 2*px + off; the max
    of the even/odd results implements the x-half of the 2x2 maxpool.
    """
    w1 = np.asarray(params["conv1_w"], np.float32)          # (6, 1, 5, 5)
    b1 = np.asarray(params["conv1_b"], np.float32)
    w2 = np.asarray(params["conv2_w"], np.float32)          # (16, 6, 5, 5)
    b2 = np.asarray(params["conv2_b"], np.float32)

    def conv1_band(off):
        m = np.zeros((5 * 28, 12 * 6), np.float32)
        for dy in range(5):
            for px in range(12):
                for dx in range(5):
                    ix = 2 * px + off + dx
                    m[dy * 28 + ix, px * 6:(px + 1) * 6] = w1[:, 0, dy, dx]
        return m

    def conv2_band(off):
        m = np.zeros((5 * 72, 4 * 16), np.float32)
        for dy in range(5):
            for px2 in range(4):
                for dx in range(5):
                    ix = 2 * px2 + off + dx
                    m[dy * 72 + ix * 6: dy * 72 + ix * 6 + 6,
                      px2 * 16:(px2 + 1) * 16] = w2[:, :, dy, dx].T
        return m

    # fc1 consumes the kernel's (h, w, c) flatten; permute its input columns from
    # PyTorch's (c, h, w) flatten once, then pad the 120 outputs to 128 lanes.
    f1 = np.asarray(params["fc1_w"], np.float32).reshape(120, 16, 4, 4)
    f1 = f1.transpose(0, 2, 3, 1).reshape(120, 256).T        # (256, 120)
    f1 = np.pad(f1, ((0, 0), (0, 8)))                        # (256, 128)
    f1b = np.pad(np.asarray(params["fc1_b"], np.float32), (0, 8)).reshape(1, 128)

    f2 = np.pad(np.asarray(params["fc2_w"], np.float32).T, ((0, 8), (0, 44)))   # (128, 128)
    f2b = np.pad(np.asarray(params["fc2_b"], np.float32), (0, 44)).reshape(1, 128)

    f3 = np.pad(np.asarray(params["fc3_w"], np.float32).T, ((0, 44), (0, 0)))   # (128, 10)
    f3b = np.asarray(params["fc3_b"], np.float32).reshape(1, 10)

    to = lambda a: jnp.asarray(a, jnp.float32)
    return {
        "w1e": to(conv1_band(0)), "w1o": to(conv1_band(1)),
        "b1": to(np.tile(b1, 12).reshape(1, 72)),
        "w2e": to(conv2_band(0)), "w2o": to(conv2_band(1)),
        "b2": to(np.tile(b2, 4).reshape(1, 64)),
        "f1w": to(f1), "f1b": to(f1b),
        "f2w": to(f2), "f2b": to(f2b),
        "f3w": to(f3), "f3b": to(f3b),
    }


# ----------------------------------------------------------------------------
# Forward pass: one fused Pallas kernel + a tiny XLA layout prep
# ----------------------------------------------------------------------------
def garment_classifier_forward(x_nchw, prep):
    B = x_nchw.shape[0]
    bb, b_pad = _batch_tiling(B)
    x = x_nchw[:, 0].astype(jnp.float32)                 # (B, 28, 28), C=1
    x = jnp.transpose(x, (1, 0, 2))                      # (28, B, 28) y-major
    if b_pad != B:
        x = jnp.pad(x, ((0, 0), (0, b_pad - B), (0, 0)))
    out = _fused_forward(x, prep, bb)                    # (B_pad, 10)
    return out[:B]


# ----------------------------------------------------------------------------
# Pure-JAX reference (PyTorch semantics, NCHW, full precision) for validation
# ----------------------------------------------------------------------------
def reference_forward(x, params):
    dn = ("NCHW", "OIHW", "NCHW")
    hi = lax.Precision.HIGHEST
    y = lax.conv_general_dilated(x, params["conv1_w"], (1, 1), "VALID",
                                 dimension_numbers=dn, precision=hi)
    y = jnp.maximum(y + params["conv1_b"][None, :, None, None], 0.0)
    y = lax.reduce_window(y, -jnp.inf, lax.max, (1, 1, 2, 2), (1, 1, 2, 2), "VALID")
    y = lax.conv_general_dilated(y, params["conv2_w"], (1, 1), "VALID",
                                 dimension_numbers=dn, precision=hi)
    y = jnp.maximum(y + params["conv2_b"][None, :, None, None], 0.0)
    y = lax.reduce_window(y, -jnp.inf, lax.max, (1, 1, 2, 2), (1, 1, 2, 2), "VALID")
    flat = y.reshape(y.shape[0], -1)
    h = jnp.maximum(jnp.dot(flat, params["fc1_w"].T, precision=hi) + params["fc1_b"], 0.0)
    h = jnp.maximum(jnp.dot(h, params["fc2_w"].T, precision=hi) + params["fc2_b"], 0.0)
    return jnp.dot(h, params["fc3_w"].T, precision=hi) + params["fc3_b"]


# ----------------------------------------------------------------------------
# Deterministic parameter init (PyTorch shapes from GarmentClassifier.__init__)
# ----------------------------------------------------------------------------
def init_params(key):
    ks = jax.random.split(key, 10)

    def u(k, shape, fan_in):
        bound = 1.0 / jnp.sqrt(jnp.float32(fan_in))
        return jax.random.uniform(k, shape, jnp.float32, -bound, bound)

    return {
        "conv1_w": u(ks[0], (6, 1, 5, 5), 1 * 5 * 5),
        "conv1_b": u(ks[1], (6,), 1 * 5 * 5),
        "conv2_w": u(ks[2], (16, 6, 5, 5), 6 * 5 * 5),
        "conv2_b": u(ks[3], (16,), 6 * 5 * 5),
        "fc1_w": u(ks[4], (120, 256), 256),
        "fc1_b": u(ks[5], (120,), 256),
        "fc2_w": u(ks[6], (84, 120), 120),
        "fc2_b": u(ks[7], (84,), 120),
        "fc3_w": u(ks[8], (10, 84), 84),
        "fc3_b": u(ks[9], (10,), 84),
    }


if __name__ == "__main__":
    key = jax.random.PRNGKey(0)
    pkey, xkey, xkey2 = jax.random.split(key, 3)
    params = init_params(pkey)
    prep = prepare_params(params)            # one-time weight re-layout

    fwd = jax.jit(garment_classifier_forward)

    # 28x28 single-channel input is required by the 16*4*4 flatten in the module.
    x = jax.random.normal(xkey, (2, 1, 28, 28), jnp.float32)
    out = jax.block_until_ready(fwd(x, prep))
    assert out.shape == (2, 10)
    assert bool(jnp.all(jnp.isfinite(out)))
    ref = reference_forward(x, params)
    max_diff = float(jnp.max(jnp.abs(out - ref)))
    assert jnp.allclose(out, ref, rtol=1e-4, atol=1e-4), f"max abs diff = {max_diff}"

    # Second check: odd batch exercises the batch-padding path and a >=2-step
    # ("parallel") grid, i.e. the tiling-robustness / megacore items from review.
    x2 = jax.random.normal(xkey2, (19, 1, 28, 28), jnp.float32)
    out2 = jax.block_until_ready(fwd(x2, prep))
    ref2 = reference_forward(x2, params)
    max_diff2 = float(jnp.max(jnp.abs(out2 - ref2)))
    assert out2.shape == (19, 10)
    assert jnp.allclose(out2, ref2, rtol=1e-4, atol=1e-4), f"max abs diff = {max_diff2}"

    print("KERNEL_OK")
</pallas_src>

<mosaic_0001>
module attributes {stable_mosaic.version = 11 : i64} {
  func.func @_garment_fused_kernel(%arg0: i32, %arg1: memref<28x8x28xf32, #tpu.memory_space<vmem>>, %arg2: memref<140x72xf32, #tpu.memory_space<vmem>>, %arg3: memref<140x72xf32, #tpu.memory_space<vmem>>, %arg4: memref<1x72xf32, #tpu.memory_space<vmem>>, %arg5: memref<360x64xf32, #tpu.memory_space<vmem>>, %arg6: memref<360x64xf32, #tpu.memory_space<vmem>>, %arg7: memref<1x64xf32, #tpu.memory_space<vmem>>, %arg8: memref<256x128xf32, #tpu.memory_space<vmem>>, %arg9: memref<1x128xf32, #tpu.memory_space<vmem>>, %arg10: memref<128x128xf32, #tpu.memory_space<vmem>>, %arg11: memref<1x128xf32, #tpu.memory_space<vmem>>, %arg12: memref<128x10xf32, #tpu.memory_space<vmem>>, %arg13: memref<1x10xf32, #tpu.memory_space<vmem>>, %arg14: memref<8x10xf32, #tpu.memory_space<vmem>>) attributes {dimension_semantics = [#tpu.dimension_semantics<parallel>], iteration_bounds = array<i64: 1>, scalar_prefetch = 0 : i64, scratch_operands = 0 : i64, tpu.core_type = #tpu.core_type<tc>, window_params = [{transform_indices = @transform_0, window_bounds = array<i64: 28, 8, 28>}, {pipeline_mode = #tpu.pipeline_mode<synchronous>, transform_indices = @transform_1, window_bounds = array<i64: 140, 72>}, {pipeline_mode = #tpu.pipeline_mode<synchronous>, transform_indices = @transform_2, window_bounds = array<i64: 140, 72>}, {pipeline_mode = #tpu.pipeline_mode<synchronous>, transform_indices = @transform_3, window_bounds = array<i64: 1, 72>}, {pipeline_mode = #tpu.pipeline_mode<synchronous>, transform_indices = @transform_4, window_bounds = array<i64: 360, 64>}, {pipeline_mode = #tpu.pipeline_mode<synchronous>, transform_indices = @transform_5, window_bounds = array<i64: 360, 64>}, {pipeline_mode = #tpu.pipeline_mode<synchronous>, transform_indices = @transform_6, window_bounds = array<i64: 1, 64>}, {pipeline_mode = #tpu.pipeline_mode<synchronous>, transform_indices = @transform_7, window_bounds = array<i64: 256, 128>}, {pipeline_mode = #tpu.pipeline_mode<synchronous>, transform_indices = @transform_8, window_bounds = array<i64: 1, 128>}, {pipeline_mode = #tpu.pipeline_mode<synchronous>, transform_indices = @transform_9, window_bounds = array<i64: 128, 128>}, {pipeline_mode = #tpu.pipeline_mode<synchronous>, transform_indices = @transform_10, window_bounds = array<i64: 1, 128>}, {pipeline_mode = #tpu.pipeline_mode<synchronous>, transform_indices = @transform_11, window_bounds = array<i64: 128, 10>}, {pipeline_mode = #tpu.pipeline_mode<synchronous>, transform_indices = @transform_12, window_bounds = array<i64: 1, 10>}, {transform_indices = @transform_13, window_bounds = array<i64: 8, 10>}]} {
    %c0 = arith.constant 0 : index
    %c0_0 = arith.constant 0 : index
    %c0_1 = arith.constant 0 : index
    %0 = vector.load %arg1[%c0, %c0_0, %c0_1] : memref<28x8x28xf32, #tpu.memory_space<vmem>>, vector<28x8x28xf32>
    %1 = vector.extract_strided_slice %0 {offsets = [0, 0, 0], sizes = [24, 8, 28], strides = [1, 1, 1]} : vector<28x8x28xf32> to vector<24x8x28xf32>
    %2 = vector.extract_strided_slice %0 {offsets = [1, 0, 0], sizes = [24, 8, 28], strides = [1, 1, 1]} : vector<28x8x28xf32> to vector<24x8x28xf32>
    %3 = vector.extract_strided_slice %0 {offsets = [2, 0, 0], sizes = [24, 8, 28], strides = [1, 1, 1]} : vector<28x8x28xf32> to vector<24x8x28xf32>
    %4 = vector.extract_strided_slice %0 {offsets = [3, 0, 0], sizes = [24, 8, 28], strides = [1, 1, 1]} : vector<28x8x28xf32> to vector<24x8x28xf32>
    %5 = vector.extract_strided_slice %0 {offsets = [4, 0, 0], sizes = [24, 8, 28], strides = [1, 1, 1]} : vector<28x8x28xf32> to vector<24x8x28xf32>
    %6 = tpu.concatenate %1, %2, %3, %4, %5 in 2 : vector<24x8x28xf32>, vector<24x8x28xf32>, vector<24x8x28xf32>, vector<24x8x28xf32>, vector<24x8x28xf32> -> vector<24x8x140xf32>
    %7 = vector.shape_cast %6 : vector<24x8x140xf32> to vector<192x140xf32>
    %c0_2 = arith.constant 0 : index
    %c0_3 = arith.constant 0 : index
    %8 = vector.load %arg2[%c0_2, %c0_3] : memref<140x72xf32, #tpu.memory_space<vmem>>, vector<140x72xf32>
    %cst = arith.constant dense<0.000000e+00> : vector<192x72xf32>
    %9 = tpu.matmul %7, %8, %cst {dimension_numbers = #tpu.dot_dimension_numbers<[1], [0], [0], [1], [0, 0, 1, 1], [], []>} : vector<192x140xf32>, vector<140x72xf32>, vector<192x72xf32> -> vector<192x72xf32>
    %c0_4 = arith.constant 0 : index
    %c0_5 = arith.constant 0 : index
    %10 = vector.load %arg3[%c0_4, %c0_5] : memref<140x72xf32, #tpu.memory_space<vmem>>, vector<140x72xf32>
    %cst_6 = arith.constant dense<0.000000e+00> : vector<192x72xf32>
    %11 = tpu.matmul %7, %10, %cst_6 {dimension_numbers = #tpu.dot_dimension_numbers<[1], [0], [0], [1], [0, 0, 1, 1], [], []>} : vector<192x140xf32>, vector<140x72xf32>, vector<192x72xf32> -> vector<192x72xf32>
    %12 = arith.maximumf %9, %11 : vector<192x72xf32>
    %c0_7 = arith.constant 0 : index
    %c0_8 = arith.constant 0 : index
    %13 = vector.load %arg4[%c0_7, %c0_8] : memref<1x72xf32, #tpu.memory_space<vmem>>, vector<1x72xf32>
    %14 = vector.broadcast %13 : vector<1x72xf32> to vector<192x72xf32>
    %15 = arith.addf %12, %14 : vector<192x72xf32>
    %16 = vector.shape_cast %15 : vector<192x72xf32> to vector<12x16x72xf32>
    %17 = vector.extract_strided_slice %16 {offsets = [0, 0, 0], sizes = [12, 8, 72], strides = [1, 1, 1]} : vector<12x16x72xf32> to vector<12x8x72xf32>
    %18 = vector.extract_strided_slice %16 {offsets = [0, 8, 0], sizes = [12, 8, 72], strides = [1, 1, 1]} : vector<12x16x72xf32> to vector<12x8x72xf32>
    %19 = arith.maximumf %17, %18 : vector<12x8x72xf32>
    %cst_9 = arith.constant 0.000000e+00 : f32
    %20 = vector.broadcast %cst_9 : f32 to vector<12x8x72xf32>
    %21 = arith.maximumf %19, %20 : vector<12x8x72xf32>
    %22 = vector.extract_strided_slice %21 {offsets = [0, 0, 0], sizes = [8, 8, 72], strides = [1, 1, 1]} : vector<12x8x72xf32> to vector<8x8x72xf32>
    %23 = vector.extract_strided_slice %21 {offsets = [1, 0, 0], sizes = [8, 8, 72], strides = [1, 1, 1]} : vector<12x8x72xf32> to vector<8x8x72xf32>
    %24 = vector.extract_strided_slice %21 {offsets = [2, 0, 0], sizes = [8, 8, 72], strides = [1, 1, 1]} : vector<12x8x72xf32> to vector<8x8x72xf32>
    %25 = vector.extract_strided_slice %21 {offsets = [3, 0, 0], sizes = [8, 8, 72], strides = [1, 1, 1]} : vector<12x8x72xf32> to vector<8x8x72xf32>
    %26 = vector.extract_strided_slice %21 {offsets = [4, 0, 0], sizes = [8, 8, 72], strides = [1, 1, 1]} : vector<12x8x72xf32> to vector<8x8x72xf32>
    %27 = tpu.concatenate %22, %23, %24, %25, %26 in 2 : vector<8x8x72xf32>, vector<8x8x72xf32>, vector<8x8x72xf32>, vector<8x8x72xf32>, vector<8x8x72xf32> -> vector<8x8x360xf32>
    %28 = vector.shape_cast %27 : vector<8x8x360xf32> to vector<64x360xf32>
    %c0_10 = arith.constant 0 : index
    %c0_11 = arith.constant 0 : index
    %29 = vector.load %arg5[%c0_10, %c0_11] : memref<360x64xf32, #tpu.memory_space<vmem>>, vector<360x64xf32>
    %cst_12 = arith.constant dense<0.000000e+00> : vector<64x64xf32>
    %30 = tpu.matmul %28, %29, %cst_12 {dimension_numbers = #tpu.dot_dimension_numbers<[1], [0], [0], [1], [0, 0, 1, 1], [], []>} : vector<64x360xf32>, vector<360x64xf32>, vector<64x64xf32> -> vector<64x64xf32>
    %c0_13 = arith.constant 0 : index
    %c0_14 = arith.constant 0 : index
    %31 = vector.load %arg6[%c0_13, %c0_14] : memref<360x64xf32, #tpu.memory_space<vmem>>, vector<360x64xf32>
    %cst_15 = arith.constant dense<0.000000e+00> : vector<64x64xf32>
    %32 = tpu.matmul %28, %31, %cst_15 {dimension_numbers = #tpu.dot_dimension_numbers<[1], [0], [0], [1], [0, 0, 1, 1], [], []>} : vector<64x360xf32>, vector<360x64xf32>, vector<64x64xf32> -> vector<64x64xf32>
    %33 = arith.maximumf %30, %32 : vector<64x64xf32>
    %c0_16 = arith.constant 0 : index
    %c0_17 = arith.constant 0 : index
    %34 = vector.load %arg7[%c0_16, %c0_17] : memref<1x64xf32, #tpu.memory_space<vmem>>, vector<1x64xf32>
    %35 = vector.broadcast %34 : vector<1x64xf32> to vector<64x64xf32>
    %36 = arith.addf %33, %35 : vector<64x64xf32>
    %37 = vector.shape_cast %36 : vector<64x64xf32> to vector<4x16x64xf32>
    %38 = vector.extract_strided_slice %37 {offsets = [0, 0, 0], sizes = [4, 8, 64], strides = [1, 1, 1]} : vector<4x16x64xf32> to vector<4x8x64xf32>
    %39 = vector.extract_strided_slice %37 {offsets = [0, 8, 0], sizes = [4, 8, 64], strides = [1, 1, 1]} : vector<4x16x64xf32> to vector<4x8x64xf32>
    %40 = arith.maximumf %38, %39 : vector<4x8x64xf32>
    %cst_18 = arith.constant 0.000000e+00 : f32
    %41 = vector.broadcast %cst_18 : f32 to vector<4x8x64xf32>
    %42 = arith.maximumf %40, %41 : vector<4x8x64xf32>
    %43 = vector.extract_strided_slice %42 {offsets = [0, 0, 0], sizes = [1, 8, 64], strides = [1, 1, 1]} : vector<4x8x64xf32> to vector<1x8x64xf32>
    %44 = vector.shape_cast %43 : vector<1x8x64xf32> to vector<8x64xf32>
    %45 = vector.extract_strided_slice %42 {offsets = [1, 0, 0], sizes = [1, 8, 64], strides = [1, 1, 1]} : vector<4x8x64xf32> to vector<1x8x64xf32>
    %46 = vector.shape_cast %45 : vector<1x8x64xf32> to vector<8x64xf32>
    %47 = vector.extract_strided_slice %42 {offsets = [2, 0, 0], sizes = [1, 8, 64], strides = [1, 1, 1]} : vector<4x8x64xf32> to vector<1x8x64xf32>
    %48 = vector.shape_cast %47 : vector<1x8x64xf32> to vector<8x64xf32>
    %49 = vector.extract_strided_slice %42 {offsets = [3, 0, 0], sizes = [1, 8, 64], strides = [1, 1, 1]} : vector<4x8x64xf32> to vector<1x8x64xf32>
    %50 = vector.shape_cast %49 : vector<1x8x64xf32> to vector<8x64xf32>
    %51 = tpu.concatenate %44, %46, %48, %50 in 1 : vector<8x64xf32>, vector<8x64xf32>, vector<8x64xf32>, vector<8x64xf32> -> vector<8x256xf32>
    %c0_19 = arith.constant 0 : index
    %c0_20 = arith.constant 0 : index
    %52 = vector.load %arg8[%c0_19, %c0_20] : memref<256x128xf32, #tpu.memory_space<vmem>>, vector<256x128xf32>
    %cst_21 = arith.constant dense<0.000000e+00> : vector<8x128xf32>
    %53 = tpu.matmul %51, %52, %cst_21 {dimension_numbers = #tpu.dot_dimension_numbers<[1], [0], [0], [1], [0, 0, 1, 1], [], []>} : vector<8x256xf32>, vector<256x128xf32>, vector<8x128xf32> -> vector<8x128xf32>
    %c0_22 = arith.constant 0 : index
    %c0_23 = arith.constant 0 : index
    %54 = vector.load %arg9[%c0_22, %c0_23] : memref<1x128xf32, #tpu.memory_space<vmem>>, vector<1x128xf32>
    %55 = vector.broadcast %54 : vector<1x128xf32> to vector<8x128xf32>
    %56 = arith.addf %53, %55 : vector<8x128xf32>
    %cst_24 = arith.constant 0.000000e+00 : f32
    %57 = vector.broadcast %cst_24 : f32 to vector<8x128xf32>
    %58 = arith.maximumf %56, %57 : vector<8x128xf32>
    %c0_25 = arith.constant 0 : index
    %c0_26 = arith.constant 0 : index
    %59 = vector.load %arg10[%c0_25, %c0_26] : memref<128x128xf32, #tpu.memory_space<vmem>>, vector<128x128xf32>
    %cst_27 = arith.constant dense<0.000000e+00> : vector<8x128xf32>
    %60 = tpu.matmul %58, %59, %cst_27 {dimension_numbers = #tpu.dot_dimension_numbers<[1], [0], [0], [1], [0, 0, 1, 1], [], []>} : vector<8x128xf32>, vector<128x128xf32>, vector<8x128xf32> -> vector<8x128xf32>
    %c0_28 = arith.constant 0 : index
    %c0_29 = arith.constant 0 : index
    %61 = vector.load %arg11[%c0_28, %c0_29] : memref<1x128xf32, #tpu.memory_space<vmem>>, vector<1x128xf32>
    %62 = vector.broadcast %61 : vector<1x128xf32> to vector<8x128xf32>
    %63 = arith.addf %60, %62 : vector<8x128xf32>
    %cst_30 = arith.constant 0.000000e+00 : f32
    %64 = vector.broadcast %cst_30 : f32 to vector<8x128xf32>
    %65 = arith.maximumf %63, %64 : vector<8x128xf32>
    %c0_31 = arith.constant 0 : index
    %c0_32 = arith.constant 0 : index
    %66 = vector.load %arg12[%c0_31, %c0_32] : memref<128x10xf32, #tpu.memory_space<vmem>>, vector<128x10xf32>
    %cst_33 = arith.constant dense<0.000000e+00> : vector<8x10xf32>
    %67 = tpu.matmul %65, %66, %cst_33 {dimension_numbers = #tpu.dot_dimension_numbers<[1], [0], [0], [1], [0, 0, 1, 1], [], []>} : vector<8x128xf32>, vector<128x10xf32>, vector<8x10xf32> -> vector<8x10xf32>
    %c0_34 = arith.constant 0 : index
    %c0_35 = arith.constant 0 : index
    %68 = vector.load %arg13[%c0_34, %c0_35] : memref<1x10xf32, #tpu.memory_space<vmem>>, vector<1x10xf32>
    %69 = vector.broadcast %68 : vector<1x10xf32> to vector<8x10xf32>
    %70 = arith.addf %67, %69 : vector<8x10xf32>
    %c0_36 = arith.constant 0 : index
    %c0_37 = arith.constant 0 : index
    %71 = vector.load %arg14[%c0_36, %c0_37] : memref<8x10xf32, #tpu.memory_space<vmem>>, vector<8x10xf32>
    tpu.vector_store %arg14[%c0_36, %c0_37], %70 {strides = array<i32>} : memref<8x10xf32, #tpu.memory_space<vmem>>, vector<8x10xf32>,
    return
  }
  func.func @transform_0(%arg0: i32) -> (i32, i32, i32) {
    %c0_i32 = arith.constant 0 : i32
    %c0_i32_0 = arith.constant 0 : i32
    %c0_i32_1 = arith.constant 0 : i32
    return %c0_i32, %arg0, %c0_i32_0 : i32, i32, i32
  }
  func.func @transform_1(%arg0: i32) -> (i32, i32) {
    %c0_i32 = arith.constant 0 : i32
    %c0_i32_0 = arith.constant 0 : i32
    %c0_i32_1 = arith.constant 0 : i32
    return %c0_i32, %c0_i32_0 : i32, i32
  }
  func.func @transform_2(%arg0: i32) -> (i32, i32) {
    %c0_i32 = arith.constant 0 : i32
    %c0_i32_0 = arith.constant 0 : i32
    %c0_i32_1 = arith.constant 0 : i32
    return %c0_i32, %c0_i32_0 : i32, i32
  }
  func.func @transform_3(%arg0: i32) -> (i32, i32) {
    %c0_i32 = arith.constant 0 : i32
    %c0_i32_0 = arith.constant 0 : i32
    %c0_i32_1 = arith.constant 0 : i32
    return %c0_i32, %c0_i32_0 : i32, i32
  }
  func.func @transform_4(%arg0: i32) -> (i32, i32) {
    %c0_i32 = arith.constant 0 : i32
    %c0_i32_0 = arith.constant 0 : i32
    %c0_i32_1 = arith.constant 0 : i32
    return %c0_i32, %c0_i32_0 : i32, i32
  }
  func.func @transform_5(%arg0: i32) -> (i32, i32) {
    %c0_i32 = arith.constant 0 : i32
    %c0_i32_0 = arith.constant 0 : i32
    %c0_i32_1 = arith.constant 0 : i32
    return %c0_i32, %c0_i32_0 : i32, i32
  }
  func.func @transform_6(%arg0: i32) -> (i32, i32) {
    %c0_i32 = arith.constant 0 : i32
    %c0_i32_0 = arith.constant 0 : i32
    %c0_i32_1 = arith.constant 0 : i32
    return %c0_i32, %c0_i32_0 : i32, i32
  }
  func.func @transform_7(%arg0: i32) -> (i32, i32) {
    %c0_i32 = arith.constant 0 : i32
    %c0_i32_0 = arith.constant 0 : i32
    %c0_i32_1 = arith.constant 0 : i32
    return %c0_i32, %c0_i32_0 : i32, i32
  }
  func.func @transform_8(%arg0: i32) -> (i32, i32) {
    %c0_i32 = arith.constant 0 : i32
    %c0_i32_0 = arith.constant 0 : i32
    %c0_i32_1 = arith.constant 0 : i32
    return %c0_i32, %c0_i32_0 : i32, i32
  }
  func.func @transform_9(%arg0: i32) -> (i32, i32) {
    %c0_i32 = arith.constant 0 : i32
    %c0_i32_0 = arith.constant 0 : i32
    %c0_i32_1 = arith.constant 0 : i32
    return %c0_i32, %c0_i32_0 : i32, i32
  }
  func.func @transform_10(%arg0: i32) -> (i32, i32) {
    %c0_i32 = arith.constant 0 : i32
    %c0_i32_0 = arith.constant 0 : i32
    %c0_i32_1 = arith.constant 0 : i32
    return %c0_i32, %c0_i32_0 : i32, i32
  }
  func.func @transform_11(%arg0: i32) -> (i32, i32) {
    %c0_i32 = arith.constant 0 : i32
    %c0_i32_0 = arith.constant 0 : i32
    %c0_i32_1 = arith.constant 0 : i32
    return %c0_i32, %c0_i32_0 : i32, i32
  }
  func.func @transform_12(%arg0: i32) -> (i32, i32) {
    %c0_i32 = arith.constant 0 : i32
    %c0_i32_0 = arith.constant 0 : i32
    %c0_i32_1 = arith.constant 0 : i32
    return %c0_i32, %c0_i32_0 : i32, i32
  }
  func.func @transform_13(%arg0: i32) -> (i32, i32) {
    %c0_i32 = arith.constant 0 : i32
    %c0_i32_0 = arith.constant 0 : i32
    return %arg0, %c0_i32 : i32, i32
  }
}

</mosaic_0001>

<llo_original>
// kernel: garment_classifier_forward.1
$region0: #{garment_classifier_forward.1}
  #allocation0 [shape = 'u32[]', space=smem, size = 0x4, offset = 0x4, fixed_abs, tag = 'smem constant byte address 0x4 - core index']
  #allocation1 [shape = 'u32[72,128]{1,0:T(1,128)}', space=vmem, size = 0x9000, scoped, tag = 'internal scratch']
  %s0 = inlined_call_operand.vmem [shape: f32[28,8,28], index: 0, kind: input, shape index: {}]
  %s1 = inlined_call_operand.vmem [shape: f32[140,72], index: 1, kind: input, shape index: {}]
  %s2 = inlined_call_operand.vmem [shape: f32[140,72], index: 2, kind: input, shape index: {}]
  %s3 = inlined_call_operand.vmem [shape: f32[1,72], index: 3, kind: input, shape index: {}]
  %s4 = inlined_call_operand.vmem [shape: f32[360,64], index: 4, kind: input, shape index: {}]
  %s5 = inlined_call_operand.vmem [shape: f32[360,64], index: 5, kind: input, shape index: {}]
  %s6 = inlined_call_operand.vmem [shape: f32[1,64], index: 6, kind: input, shape index: {}]
  %s7 = inlined_call_operand.vmem [shape: f32[256,128], index: 7, kind: input, shape index: {}]
  %s8 = inlined_call_operand.vmem [shape: f32[1,128], index: 8, kind: input, shape index: {}]
  %s9 = inlined_call_operand.vmem [shape: f32[128,128], index: 9, kind: input, shape index: {}]
  %s10 = inlined_call_operand.vmem [shape: f32[1,128], index: 10, kind: input, shape index: {}]
  %s11 = inlined_call_operand.vmem [shape: f32[128,10], index: 11, kind: input, shape index: {}]
  %s12 = inlined_call_operand.vmem [shape: f32[1,10], index: 12, kind: input, shape index: {}]
  %s13 = inlined_call_operand.vmem [shape: f32[8,10], index: 13, kind: output, shape index: {}]
  %s14 = sld [smem:[#allocation0]]
  $region62: #{garment_classifier_forward.1} parent=0
    _
  %s16 = ssub.s32 1, %s14
  %s17 = scalar_select 0, %s16, %s14
  // Predicated region
  $region2: #{garment_classifier_forward.1} parent=0 // pred_check
    _
  $region3: #{garment_classifier_forward.1} parent=0 // pred_check_branch
    %19 = sbr.rel (0) target = $region5
  $region4: #{garment_classifier_forward.1} parent=0 // pred_region
    _
  $region5: #{garment_classifier_forward.1} parent=0 // pred_fallthru
    _
  // Predicated region
  $region6: #{garment_classifier_forward.1} parent=0 // pred_check
    _
  $region7: #{garment_classifier_forward.1} parent=0 // pred_check_branch
    %21 = sbr.rel (0) target = $region9
  $region8: #{garment_classifier_forward.1} parent=0 // pred_region
    _
  $region9: #{garment_classifier_forward.1} parent=0 // pred_fallthru
    _
  // Predicated region
  $region10: #{garment_classifier_forward.1} parent=0 // pred_check
    _
  $region11: #{garment_classifier_forward.1} parent=0 // pred_check_branch
    %23 = sbr.rel (0) target = $region13
  $region12: #{garment_classifier_forward.1} parent=0 // pred_region
    _
  $region13: #{garment_classifier_forward.1} parent=0 // pred_fallthru
    _
  // Predicated region
  $region14: #{garment_classifier_forward.1} parent=0 // pred_check
    _
  $region15: #{garment_classifier_forward.1} parent=0 // pred_check_branch
    %25 = sbr.rel (0) target = $region17
  $region16: #{garment_classifier_forward.1} parent=0 // pred_region
    _
  $region17: #{garment_classifier_forward.1} parent=0 // pred_fallthru
    _
  // Predicated region
  $region18: #{garment_classifier_forward.1} parent=0 // pred_check
    _
  $region19: #{garment_classifier_forward.1} parent=0 // pred_check_branch
    %27 = sbr.rel (0) target = $region21
  $region20: #{garment_classifier_forward.1} parent=0 // pred_region
    _
  $region21: #{garment_classifier_forward.1} parent=0 // pred_fallthru
    _
  // Predicated region
  $region22: #{garment_classifier_forward.1} parent=0 // pred_check
    _
  $region23: #{garment_classifier_forward.1} parent=0 // pred_check_branch
    %29 = sbr.rel (0) target = $region25
  $region24: #{garment_classifier_forward.1} parent=0 // pred_region
    _
  $region25: #{garment_classifier_forward.1} parent=0 // pred_fallthru
    _
  // Predicated region
  $region26: #{garment_classifier_forward.1} parent=0 // pred_check
    _
  $region27: #{garment_classifier_forward.1} parent=0 // pred_check_branch
    %31 = sbr.rel (0) target = $region29
  $region28: #{garment_classifier_forward.1} parent=0 // pred_region
    _
  $region29: #{garment_classifier_forward.1} parent=0 // pred_fallthru
    _
  // Predicated region
  $region30: #{garment_classifier_forward.1} parent=0 // pred_check
    _
  $region31: #{garment_classifier_forward.1} parent=0 // pred_check_branch
    %33 = sbr.rel (0) target = $region33
  $region32: #{garment_classifier_forward.1} parent=0 // pred_region
    _
  $region33: #{garment_classifier_forward.1} parent=0 // pred_fallthru
    _
  // Predicated region
  $region34: #{garment_classifier_forward.1} parent=0 // pred_check
    _
  $region35: #{garment_classifier_forward.1} parent=0 // pred_check_branch
    %35 = sbr.rel (0) target = $region37
  $region36: #{garment_classifier_forward.1} parent=0 // pred_region
    _
  $region37: #{garment_classifier_forward.1} parent=0 // pred_fallthru
    _
  // Predicated region
  $region38: #{garment_classifier_forward.1} parent=0 // pred_check
    _
  $region39: #{garment_classifier_forward.1} parent=0 // pred_check_branch
    %37 = sbr.rel (0) target = $region41
  $region40: #{garment_classifier_forward.1} parent=0 // pred_region
    _
  $region41: #{garment_classifier_forward.1} parent=0 // pred_fallthru
    _
  // Predicated region
  $region42: #{garment_classifier_forward.1} parent=0 // pred_check
    _
  $region43: #{garment_classifier_forward.1} parent=0 // pred_check_branch
    %39 = sbr.rel (0) target = $region45
  $region44: #{garment_classifier_forward.1} parent=0 // pred_region
    _
  $region45: #{garment_classifier_forward.1} parent=0 // pred_fallthru
    _
  // Predicated region
  $region46: #{garment_classifier_forward.1} parent=0 // pred_check
    _
  $region47: #{garment_classifier_forward.1} parent=0 // pred_check_branch
    %41 = sbr.rel (0) target = $region49
  $region48: #{garment_classifier_forward.1} parent=0 // pred_region
    _
  $region49: #{garment_classifier_forward.1} parent=0 // pred_fallthru
    _
  // Predicated region
  $region50: #{garment_classifier_forward.1} parent=0 // pred_check
    _
  $region51: #{garment_classifier_forward.1} parent=0 // pred_check_branch
    %43 = sbr.rel (0) target = $region53
  $region52: #{garment_classifier_forward.1} parent=0 // pred_region
    _
  $region53: #{garment_classifier_forward.1} parent=0 // pred_fallthru
    _
  %v44 = vld [vmem:[%s0] sm:$0xff]
  %v45 = vld [vmem:[%s0 + $0x8] sm:$0xff]
  %v46 = vld [vmem:[%s0 + $0x10] sm:$0xff]
  %v47 = vld [vmem:[%s0 + $0x18] sm:$0xff]
  %v48 = vld [vmem:[%s0 + $0x20] sm:$0xff]
  %v49 = vld [vmem:[%s0 + $0x28] sm:$0xff]
  %v50 = vld [vmem:[%s0 + $0x30] sm:$0xff]
  %v51 = vld [vmem:[%s0 + $0x38] sm:$0xff]
  %v52 = vld [vmem:[%s0 + $0x40] sm:$0xff]
  %v53 = vld [vmem:[%s0 + $0x48] sm:$0xff]
  %v54 = vld [vmem:[%s0 + $0x50] sm:$0xff]
  %v55 = vld [vmem:[%s0 + $0x58] sm:$0xff]
  %v56 = vld [vmem:[%s0 + $0x60] sm:$0xff]
  %v57 = vld [vmem:[%s0 + $0x68] sm:$0xff]
  %v58 = vld [vmem:[%s0 + $0x70] sm:$0xff]
  %v59 = vld [vmem:[%s0 + $0x78] sm:$0xff]
  %v60 = vld [vmem:[%s0 + $0x80] sm:$0xff]
  %v61 = vld [vmem:[%s0 + $0x88] sm:$0xff]
  %v62 = vld [vmem:[%s0 + $0x90] sm:$0xff]
  %v63 = vld [vmem:[%s0 + $0x98] sm:$0xff]
  %v64 = vld [vmem:[%s0 + $0xa0] sm:$0xff]
  %v65 = vld [vmem:[%s0 + $0xa8] sm:$0xff]
  %v66 = vld [vmem:[%s0 + $0xb0] sm:$0xff]
  %v67 = vld [vmem:[%s0 + $0xb8] sm:$0xff]
  %v68 = vld [vmem:[%s0 + $0xc0] sm:$0xff]
  %v69 = vld [vmem:[%s0 + $0xc8] sm:$0xff]
  %v70 = vld [vmem:[%s0 + $0xd0] sm:$0xff]
  %v71 = vld [vmem:[%s0 + $0xd8] sm:$0xff]
  %96 = vrot.lane.b32.xlu0 %v45, 28
  %v97 = vpop.permute.xlu0 %96
  %98 = vrot.lane.b32.xlu0 %v46, 28
  %v99 = vpop.permute.xlu0 %98
  %100 = vrot.lane.b32.xlu0 %v47, 28
  %v101 = vpop.permute.xlu0 %100
  %102 = vrot.lane.b32.xlu0 %v48, 28
  %v103 = vpop.permute.xlu0 %102
  %104 = vrot.lane.b32.xlu0 %v49, 28
  %v105 = vpop.permute.xlu0 %104
  %106 = vrot.lane.b32.xlu0 %v50, 28
  %v107 = vpop.permute.xlu0 %106
  %108 = vrot.lane.b32.xlu0 %v51, 28
  %v109 = vpop.permute.xlu0 %108
  %110 = vrot.lane.b32.xlu0 %v52, 28
  %v111 = vpop.permute.xlu0 %110
  %112 = vrot.lane.b32.xlu0 %v53, 28
  %v113 = vpop.permute.xlu0 %112
  %114 = vrot.lane.b32.xlu0 %v54, 28
  %v115 = vpop.permute.xlu0 %114
  %116 = vrot.lane.b32.xlu0 %v55, 28
  %v117 = vpop.permute.xlu0 %116
  %118 = vrot.lane.b32.xlu0 %v56, 28
  %v119 = vpop.permute.xlu0 %118
  %120 = vrot.lane.b32.xlu0 %v57, 28
  %v121 = vpop.permute.xlu0 %120
  %122 = vrot.lane.b32.xlu0 %v58, 28
  %v123 = vpop.permute.xlu0 %122
  %124 = vrot.lane.b32.xlu0 %v59, 28
  %v125 = vpop.permute.xlu0 %124
  %126 = vrot.lane.b32.xlu0 %v60, 28
  %v127 = vpop.permute.xlu0 %126
  %128 = vrot.lane.b32.xlu0 %v61, 28
  %v129 = vpop.permute.xlu0 %128
  %130 = vrot.lane.b32.xlu0 %v62, 28
  %v131 = vpop.permute.xlu0 %130
  %132 = vrot.lane.b32.xlu0 %v63, 28
  %v133 = vpop.permute.xlu0 %132
  %134 = vrot.lane.b32.xlu0 %v64, 28
  %v135 = vpop.permute.xlu0 %134
  %136 = vrot.lane.b32.xlu0 %v65, 28
  %v137 = vpop.permute.xlu0 %136
  %138 = vrot.lane.b32.xlu0 %v66, 28
  %v139 = vpop.permute.xlu0 %138
  %140 = vrot.lane.b32.xlu0 %v67, 28
  %v141 = vpop.permute.xlu0 %140
  %142 = vrot.lane.b32.xlu0 %v68, 28
  %v143 = vpop.permute.xlu0 %142
  %169 = vrot.lane.b32.xlu0 %v46, 56
  %v170 = vpop.permute.xlu0 %169
  %171 = vrot.lane.b32.xlu0 %v47, 56
  %v172 = vpop.permute.xlu0 %171
  %173 = vrot.lane.b32.xlu0 %v48, 56
  %v174 = vpop.permute.xlu0 %173
  %175 = vrot.lane.b32.xlu0 %v49, 56
  %v176 = vpop.permute.xlu0 %175
  %177 = vrot.lane.b32.xlu0 %v50, 56
  %v178 = vpop.permute.xlu0 %177
  %179 = vrot.lane.b32.xlu0 %v51, 56
  %v180 = vpop.permute.xlu0 %179
  %181 = vrot.lane.b32.xlu0 %v52, 56
  %v182 = vpop.permute.xlu0 %181
  %183 = vrot.lane.b32.xlu0 %v53, 56
  %v184 = vpop.permute.xlu0 %183
  %185 = vrot.lane.b32.xlu0 %v54, 56
  %v186 = vpop.permute.xlu0 %185
  %187 = vrot.lane.b32.xlu0 %v55, 56
  %v188 = vpop.permute.xlu0 %187
  %189 = vrot.lane.b32.xlu0 %v56, 56
  %v190 = vpop.permute.xlu0 %189
  %191 = vrot.lane.b32.xlu0 %v57, 56
  %v192 = vpop.permute.xlu0 %191
  %193 = vrot.lane.b32.xlu0 %v58, 56
  %v194 = vpop.permute.xlu0 %193
  %195 = vrot.lane.b32.xlu0 %v59, 56
  %v196 = vpop.permute.xlu0 %195
  %197 = vrot.lane.b32.xlu0 %v60, 56
  %v198 = vpop.permute.xlu0 %197
  %199 = vrot.lane.b32.xlu0 %v61, 56
  %v200 = vpop.permute.xlu0 %199
  %201 = vrot.lane.b32.xlu0 %v62, 56
  %v202 = vpop.permute.xlu0 %201
  %203 = vrot.lane.b32.xlu0 %v63, 56
  %v204 = vpop.permute.xlu0 %203
  %205 = vrot.lane.b32.xlu0 %v64, 56
  %v206 = vpop.permute.xlu0 %205
  %207 = vrot.lane.b32.xlu0 %v65, 56
  %v208 = vpop.permute.xlu0 %207
  %209 = vrot.lane.b32.xlu0 %v66, 56
  %v210 = vpop.permute.xlu0 %209
  %211 = vrot.lane.b32.xlu0 %v67, 56
  %v212 = vpop.permute.xlu0 %211
  %213 = vrot.lane.b32.xlu0 %v68, 56
  %v214 = vpop.permute.xlu0 %213
  %215 = vrot.lane.b32.xlu0 %v69, 56
  %v216 = vpop.permute.xlu0 %215
  %242 = vrot.lane.b32.xlu0 %v47, 84
  %v243 = vpop.permute.xlu0 %242
  %244 = vrot.lane.b32.xlu0 %v48, 84
  %v245 = vpop.permute.xlu0 %244
  %246 = vrot.lane.b32.xlu0 %v49, 84
  %v247 = vpop.permute.xlu0 %246
  %248 = vrot.lane.b32.xlu0 %v50, 84
  %v249 = vpop.permute.xlu0 %248
  %250 = vrot.lane.b32.xlu0 %v51, 84
  %v251 = vpop.permute.xlu0 %250
  %252 = vrot.lane.b32.xlu0 %v52, 84
  %v253 = vpop.permute.xlu0 %252
  %254 = vrot.lane.b32.xlu0 %v53, 84
  %v255 = vpop.permute.xlu0 %254
  %256 = vrot.lane.b32.xlu0 %v54, 84
  %v257 = vpop.permute.xlu0 %256
  %258 = vrot.lane.b32.xlu0 %v55, 84
  %v259 = vpop.permute.xlu0 %258
  %260 = vrot.lane.b32.xlu0 %v56, 84
  %v261 = vpop.permute.xlu0 %260
  %262 = vrot.lane.b32.xlu0 %v57, 84
  %v263 = vpop.permute.xlu0 %262
  %264 = vrot.lane.b32.xlu0 %v58, 84
  %v265 = vpop.permute.xlu0 %264
  %266 = vrot.lane.b32.xlu0 %v59, 84
  %v267 = vpop.permute.xlu0 %266
  %268 = vrot.lane.b32.xlu0 %v60, 84
  %v269 = vpop.permute.xlu0 %268
  %270 = vrot.lane.b32.xlu0 %v61, 84
  %v271 = vpop.permute.xlu0 %270
  %272 = vrot.lane.b32.xlu0 %v62, 84
  %v273 = vpop.permute.xlu0 %272
  %274 = vrot.lane.b32.xlu0 %v63, 84
  %v275 = vpop.permute.xlu0 %274
  %276 = vrot.lane.b32.xlu0 %v64, 84
  %v277 = vpop.permute.xlu0 %276
  %278 = vrot.lane.b32.xlu0 %v65, 84
  %v279 = vpop.permute.xlu0 %278
  %280 = vrot.lane.b32.xlu0 %v66, 84
  %v281 = vpop.permute.xlu0 %280
  %282 = vrot.lane.b32.xlu0 %v67, 84
  %v283 = vpop.permute.xlu0 %282
  %284 = vrot.lane.b32.xlu0 %v68, 84
  %v285 = vpop.permute.xlu0 %284
  %286 = vrot.lane.b32.xlu0 %v69, 84
  %v287 = vpop.permute.xlu0 %286
  %288 = vrot.lane.b32.xlu0 %v70, 84
  %v289 = vpop.permute.xlu0 %288
  %315 = vrot.lane.b32.xlu0 %v48, 112
  %v316 = vpop.permute.xlu0 %315
  %317 = vrot.lane.b32.xlu0 %v49, 112
  %v318 = vpop.permute.xlu0 %317
  %319 = vrot.lane.b32.xlu0 %v50, 112
  %v320 = vpop.permute.xlu0 %319
  %321 = vrot.lane.b32.xlu0 %v51, 112
  %v322 = vpop.permute.xlu0 %321
  %323 = vrot.lane.b32.xlu0 %v52, 112
  %v324 = vpop.permute.xlu0 %323
  %325 = vrot.lane.b32.xlu0 %v53, 112
  %v326 = vpop.permute.xlu0 %325
  %327 = vrot.lane.b32.xlu0 %v54, 112
  %v328 = vpop.permute.xlu0 %327
  %329 = vrot.lane.b32.xlu0 %v55, 112
  %v330 = vpop.permute.xlu0 %329
  %331 = vrot.lane.b32.xlu0 %v56, 112
  %v332 = vpop.permute.xlu0 %331
  %333 = vrot.lane.b32.xlu0 %v57, 112
  %v334 = vpop.permute.xlu0 %333
  %335 = vrot.lane.b32.xlu0 %v58, 112
  %v336 = vpop.permute.xlu0 %335
  %337 = vrot.lane.b32.xlu0 %v59, 112
  %v338 = vpop.permute.xlu0 %337
  %339 = vrot.lane.b32.xlu0 %v60, 112
  %v340 = vpop.permute.xlu0 %339
  %341 = vrot.lane.b32.xlu0 %v61, 112
  %v342 = vpop.permute.xlu0 %341
  %343 = vrot.lane.b32.xlu0 %v62, 112
  %v344 = vpop.permute.xlu0 %343
  %345 = vrot.lane.b32.xlu0 %v63, 112
  %v346 = vpop.permute.xlu0 %345
  %347 = vrot.lane.b32.xlu0 %v64, 112
  %v348 = vpop.permute.xlu0 %347
  %349 = vrot.lane.b32.xlu0 %v65, 112
  %v350 = vpop.permute.xlu0 %349
  %351 = vrot.lane.b32.xlu0 %v66, 112
  %v352 = vpop.permute.xlu0 %351
  %353 = vrot.lane.b32.xlu0 %v67, 112
  %v354 = vpop.permute.xlu0 %353
  %355 = vrot.lane.b32.xlu0 %v68, 112
  %v356 = vpop.permute.xlu0 %355
  %357 = vrot.lane.b32.xlu0 %v69, 112
  %v358 = vpop.permute.xlu0 %357
  %359 = vrot.lane.b32.xlu0 %v70, 112
  %v360 = vpop.permute.xlu0 %359
  %361 = vrot.lane.b32.xlu0 %v71, 112
  %v362 = vpop.permute.xlu0 %361
  %vm387 = vcmask 228352
  %v388 = vsel %vm387, %v44, %v97
  %v389 = vsel %vm387, %v45, %v99
  %v390 = vsel %vm387, %v46, %v101
  %v391 = vsel %vm387, %v47, %v103
  %v392 = vsel %vm387, %v48, %v105
  %v393 = vsel %vm387, %v49, %v107
  %v394 = vsel %vm387, %v50, %v109
  %v395 = vsel %vm387, %v51, %v111
  %v396 = vsel %vm387, %v52, %v113
  %v397 = vsel %vm387, %v53, %v115
  %v398 = vsel %vm387, %v54, %v117
  %v399 = vsel %vm387, %v55, %v119
  %v400 = vsel %vm387, %v56, %v121
  %v401 = vsel %vm387, %v57, %v123
  %v402 = vsel %vm387, %v58, %v125
  %v403 = vsel %vm387, %v59, %v127
  %v404 = vsel %vm387, %v60, %v129
  %v405 = vsel %vm387, %v61, %v131
  %v406 = vsel %vm387, %v62, %v133
  %v407 = vsel %vm387, %v63, %v135
  %v408 = vsel %vm387, %v64, %v137
  %v409 = vsel %vm387, %v65, %v139
  %v410 = vsel %vm387, %v66, %v141
  %v411 = vsel %vm387, %v67, %v143
  %vm412 = vcmask 457728
  %v413 = vsel %vm412, %v388, %v170
  %v414 = vsel %vm412, %v389, %v172
  %v415 = vsel %vm412, %v390, %v174
  %v416 = vsel %vm412, %v391, %v176
  %v417 = vsel %vm412, %v392, %v178
  %v418 = vsel %vm412, %v393, %v180
  %v419 = vsel %vm412, %v394, %v182
  %v420 = vsel %vm412, %v395, %v184
  %v421 = vsel %vm412, %v396, %v186
  %v422 = vsel %vm412, %v397, %v188
  %v423 = vsel %vm412, %v398, %v190
  %v424 = vsel %vm412, %v399, %v192
  %v425 = vsel %vm412, %v400, %v194
  %v426 = vsel %vm412, %v401, %v196
  %v427 = vsel %vm412, %v402, %v198
  %v428 = vsel %vm412, %v403, %v200
  %v429 = vsel %vm412, %v404, %v202
  %v430 = vsel %vm412, %v405, %v204
  %v431 = vsel %vm412, %v406, %v206
  %v432 = vsel %vm412, %v407, %v208
  %v433 = vsel %vm412, %v408, %v210
  %v434 = vsel %vm412, %v409, %v212
  %v435 = vsel %vm412, %v410, %v214
  %v436 = vsel %vm412, %v411, %v216
  %vm437 = vcmask 687104
  %v438 = vsel %vm437, %v413, %v243
  %v439 = vsel %vm437, %v414, %v245
  %v440 = vsel %vm437, %v415, %v247
  %v441 = vsel %vm437, %v416, %v249
  %v442 = vsel %vm437, %v417, %v251
  %v443 = vsel %vm437, %v418, %v253
  %v444 = vsel %vm437, %v419, %v255
  %v445 = vsel %vm437, %v420, %v257
  %v446 = vsel %vm437, %v421, %v259
  %v447 = vsel %vm437, %v422, %v261
  %v448 = vsel %vm437, %v423, %v263
  %v449 = vsel %vm437, %v424, %v265
  %v450 = vsel %vm437, %v425, %v267
  %v451 = vsel %vm437, %v426, %v269
  %v452 = vsel %vm437, %v427, %v271
  %v453 = vsel %vm437, %v428, %v273
  %v454 = vsel %vm437, %v429, %v275
  %v455 = vsel %vm437, %v430, %v277
  %v456 = vsel %vm437, %v431, %v279
  %v457 = vsel %vm437, %v432, %v281
  %v458 = vsel %vm437, %v433, %v283
  %v459 = vsel %vm437, %v434, %v285
  %v460 = vsel %vm437, %v435, %v287
  %v461 = vsel %vm437, %v436, %v289
  %vm462 = vcmask 916480
  %v463 = vsel %vm462, %v438, %v316
  %v464 = vsel %vm462, %v439, %v318
  %v465 = vsel %vm462, %v440, %v320
  %v466 = vsel %vm462, %v441, %v322
  %v467 = vsel %vm462, %v442, %v324
  %v468 = vsel %vm462, %v443, %v326
  %v469 = vsel %vm462, %v444, %v328
  %v470 = vsel %vm462, %v445, %v330
  %v471 = vsel %vm462, %v446, %v332
  %v472 = vsel %vm462, %v447, %v334
  %v473 = vsel %vm462, %v448, %v336
  %v474 = vsel %vm462, %v449, %v338
  %v475 = vsel %vm462, %v450, %v340
  %v476 = vsel %vm462, %v451, %v342
  %v477 = vsel %vm462, %v452, %v344
  %v478 = vsel %vm462, %v453, %v346
  %v479 = vsel %vm462, %v454, %v348
  %v480 = vsel %vm462, %v455, %v350
  %v481 = vsel %vm462, %v456, %v352
  %v482 = vsel %vm462, %v457, %v354
  %v483 = vsel %vm462, %v458, %v356
  %v484 = vsel %vm462, %v459, %v358
  %v485 = vsel %vm462, %v460, %v360
  %v486 = vsel %vm462, %v461, %v362
  %v487 = vld [vmem:[%s1] sm:$0xff]
  %v488 = vld [vmem:[%s1 + $0x8] sm:$0xff]
  %v489 = vld [vmem:[%s1 + $0x10] sm:$0xff]
  %v490 = vld [vmem:[%s1 + $0x18] sm:$0xff]
  %v491 = vld [vmem:[%s1 + $0x20] sm:$0xff]
  %v492 = vld [vmem:[%s1 + $0x28] sm:$0xff]
  %v493 = vld [vmem:[%s1 + $0x30] sm:$0xff]
  %v494 = vld [vmem:[%s1 + $0x38] sm:$0xff]
  %v495 = vld [vmem:[%s1 + $0x40] sm:$0xff]
  %v496 = vld [vmem:[%s1 + $0x48] sm:$0xff]
  %v497 = vld [vmem:[%s1 + $0x50] sm:$0xff]
  %v498 = vld [vmem:[%s1 + $0x58] sm:$0xff]
  %v499 = vld [vmem:[%s1 + $0x60] sm:$0xff]
  %v500 = vld [vmem:[%s1 + $0x68] sm:$0xff]
  %v501 = vld [vmem:[%s1 + $0x70] sm:$0xff]
  %v502 = vld [vmem:[%s1 + $0x78] sm:$0xff]
  %v503 = vld [vmem:[%s1 + $0x80] sm:$0xff]
  %v504 = vld [vmem:[%s1 + $0x88] sm:$0xf]
  %vm505 = vcmask 97280
  %v506 = vsel %vm505, %v316, 0
  %v508 = vsel %vm505, %v318, 0
  %v510 = vsel %vm505, %v320, 0
  %v512 = vsel %vm505, %v322, 0
  %v514 = vsel %vm505, %v324, 0
  %v516 = vsel %vm505, %v326, 0
  %v518 = vsel %vm505, %v328, 0
  %v520 = vsel %vm505, %v330, 0
  %v522 = vsel %vm505, %v332, 0
  %v524 = vsel %vm505, %v334, 0
  %v526 = vsel %vm505, %v336, 0
  %v528 = vsel %vm505, %v338, 0
  %v530 = vsel %vm505, %v340, 0
  %v532 = vsel %vm505, %v342, 0
  %v534 = vsel %vm505, %v344, 0
  %v536 = vsel %vm505, %v346, 0
  %v538 = vsel %vm505, %v348, 0
  %v540 = vsel %vm505, %v350, 0
  %v542 = vsel %vm505, %v352, 0
  %v544 = vsel %vm505, %v354, 0
  %v546 = vsel %vm505, %v356, 0
  %v548 = vsel %vm505, %v358, 0
  %v550 = vsel %vm505, %v360, 0
  %v552 = vsel %vm505, %v362, 0
  %vm554 = vcmask 1043456
  %v556 = vsel %vm554, %v504, 0
  %558 = vmatpush.msra.mxu0 %v502
  %559 = vmatpush.msra.mxu0 %v501
  %560 = vmatpush.msra.mxu0 %v500
  %561 = vmatpush.msra.mxu0 %v499
  %562 = vmatpush.msra.mxu0 %v498
  %563 = vmatpush.msra.mxu0 %v497
  %564 = vmatpush.msra.mxu0 %v496
  %565 = vmatpush.msra.mxu0 %v495
  %566 = vmatpush.msra.mxu0 %v494
  %567 = vmatpush.msra.mxu0 %v493
  %568 = vmatpush.msra.mxu0 %v492
  %569 = vmatpush.msra.mxu0 %v491
  %570 = vmatpush.msra.mxu0 %v490
  %571 = vmatpush.msra.mxu0 %v489
  %572 = vmatpush.msra.mxu0 %v488
  %573 = vmatpush.msra.mxu0 %v487
  %574 = vmatmul.f32.gmra.mxu0 %v463
  %v575 = vpop.f32.mrf.mxu0
  %v576 = vadd.f32 0.0, %v575
  %577 = vmatmul.f32.gmra.mxu0 %v464
  %v578 = vpop.f32.mrf.mxu0
  %v579 = vadd.f32 0.0, %v578
  %580 = vmatmul.f32.gmra.mxu0 %v465
  %v581 = vpop.f32.mrf.mxu0
  %v582 = vadd.f32 0.0, %v581
  %583 = vmatmul.f32.gmra.mxu0 %v466
  %v584 = vpop.f32.mrf.mxu0
  %v585 = vadd.f32 0.0, %v584
  %586 = vmatmul.f32.gmra.mxu0 %v467
  %v587 = vpop.f32.mrf.mxu0
  %v588 = vadd.f32 0.0, %v587
  %589 = vmatmul.f32.gmra.mxu0 %v468
  %v590 = vpop.f32.mrf.mxu0
  %v591 = vadd.f32 0.0, %v590
  %592 = vmatmul.f32.gmra.mxu0 %v469
  %v593 = vpop.f32.mrf.mxu0
  %v594 = vadd.f32 0.0, %v593
  %595 = vmatmul.f32.gmra.mxu0 %v470
  %v596 = vpop.f32.mrf.mxu0
  %v597 = vadd.f32 0.0, %v596
  %598 = vmatmul.f32.gmra.mxu0 %v471
  %v599 = vpop.f32.mrf.mxu0
  %v600 = vadd.f32 0.0, %v599
  %601 = vmatmul.f32.gmra.mxu0 %v472
  %v602 = vpop.f32.mrf.mxu0
  %v603 = vadd.f32 0.0, %v602
  %604 = vmatmul.f32.gmra.mxu0 %v473
  %v605 = vpop.f32.mrf.mxu0
  %v606 = vadd.f32 0.0, %v605
  %607 = vmatmul.f32.gmra.mxu0 %v474
  %v608 = vpop.f32.mrf.mxu0
  %v609 = vadd.f32 0.0, %v608
  %610 = vmatmul.f32.gmra.mxu0 %v475
  %v611 = vpop.f32.mrf.mxu0
  %v612 = vadd.f32 0.0, %v611
  %613 = vmatmul.f32.gmra.mxu0 %v476
  %v614 = vpop.f32.mrf.mxu0
  %v615 = vadd.f32 0.0, %v614
  %616 = vmatmul.f32.gmra.mxu0 %v477
  %v617 = vpop.f32.mrf.mxu0
  %v618 = vadd.f32 0.0, %v617
  %619 = vmatmul.f32.gmra.mxu0 %v478
  %v620 = vpop.f32.mrf.mxu0
  %v621 = vadd.f32 0.0, %v620
  %622 = vmatmul.f32.gmra.mxu0 %v479
  %v623 = vpop.f32.mrf.mxu0
  %v624 = vadd.f32 0.0, %v623
  %625 = vmatmul.f32.gmra.mxu0 %v480
  %v626 = vpop.f32.mrf.mxu0
  %v627 = vadd.f32 0.0, %v626
  %628 = vmatmul.f32.gmra.mxu0 %v481
  %v629 = vpop.f32.mrf.mxu0
  %v630 = vadd.f32 0.0, %v629
  %631 = vmatmul.f32.gmra.mxu0 %v482
  %v632 = vpop.f32.mrf.mxu0
  %v633 = vadd.f32 0.0, %v632
  %634 = vmatmul.f32.gmra.mxu0 %v483
  %v635 = vpop.f32.mrf.mxu0
  %v636 = vadd.f32 0.0, %v635
  %637 = vmatmul.f32.gmra.mxu0 %v484
  %v638 = vpop.f32.mrf.mxu0
  %v639 = vadd.f32 0.0, %v638
  %640 = vmatmul.f32.gmra.mxu0 %v485
  %v641 = vpop.f32.mrf.mxu0
  %v642 = vadd.f32 0.0, %v641
  %643 = vmatmul.f32.gmra.mxu0 %v486
  %v644 = vpop.f32.mrf.mxu0
  %v645 = vadd.f32 0.0, %v644
  %646 = vdwg.mxu0
  %647 = vmatpush.msra.mxu0 0.0
  %648 = vmatpush.msra.mxu0 0.0
  %649 = vmatpush.msra.mxu0 0.0
  %650 = vmatpush.msra.mxu0 0.0
  %651 = vmatpush.msra.mxu0 0.0
  %652 = vmatpush.msra.mxu0 0.0
  %653 = vmatpush.msra.mxu0 0.0
  %654 = vmatpush.msra.mxu0 0.0
  %655 = vmatpush.msra.mxu0 0.0
  %656 = vmatpush.msra.mxu0 0.0
  %657 = vmatpush.msra.mxu0 0.0
  %658 = vmatpush.msra.mxu0 0.0
  %659 = vmatpush.msra.mxu0 0.0
  %660 = vmatpush.msra.mxu0 0.0
  %661 = vmatpush.msra.mxu0 %v556
  %662 = vmatpush.msra.mxu0 %v503
  %663 = vmatmul.f32.gmra.mxu0 %v506
  %v664 = vpop.f32.mrf.mxu0
  %v665 = vadd.f32 %v576, %v664
  %666 = vmatmul.f32.gmra.mxu0 %v508
  %v667 = vpop.f32.mrf.mxu0
  %v668 = vadd.f32 %v579, %v667
  %669 = vmatmul.f32.gmra.mxu0 %v510
  %v670 = vpop.f32.mrf.mxu0
  %v671 = vadd.f32 %v582, %v670
  %672 = vmatmul.f32.gmra.mxu0 %v512
  %v673 = vpop.f32.mrf.mxu0
  %v674 = vadd.f32 %v585, %v673
  %675 = vmatmul.f32.gmra.mxu0 %v514
  %v676 = vpop.f32.mrf.mxu0
  %v677 = vadd.f32 %v588, %v676
  %678 = vmatmul.f32.gmra.mxu0 %v516
  %v679 = vpop.f32.mrf.mxu0
  %v680 = vadd.f32 %v591, %v679
  %681 = vmatmul.f32.gmra.mxu0 %v518
  %v682 = vpop.f32.mrf.mxu0
  %v683 = vadd.f32 %v594, %v682
  %684 = vmatmul.f32.gmra.mxu0 %v520
  %v685 = vpop.f32.mrf.mxu0
  %v686 = vadd.f32 %v597, %v685
  %687 = vmatmul.f32.gmra.mxu0 %v522
  %v688 = vpop.f32.mrf.mxu0
  %v689 = vadd.f32 %v600, %v688
  %690 = vmatmul.f32.gmra.mxu0 %v524
  %v691 = vpop.f32.mrf.mxu0
  %v692 = vadd.f32 %v603, %v691
  %693 = vmatmul.f32.gmra.mxu0 %v526
  %v694 = vpop.f32.mrf.mxu0
  %v695 = vadd.f32 %v606, %v694
  %696 = vmatmul.f32.gmra.mxu0 %v528
  %v697 = vpop.f32.mrf.mxu0
  %v698 = vadd.f32 %v609, %v697
  %699 = vmatmul.f32.gmra.mxu0 %v530
  %v700 = vpop.f32.mrf.mxu0
  %v701 = vadd.f32 %v612, %v700
  %702 = vmatmul.f32.gmra.mxu0 %v532
  %v703 = vpop.f32.mrf.mxu0
  %v704 = vadd.f32 %v615, %v703
  %705 = vmatmul.f32.gmra.mxu0 %v534
  %v706 = vpop.f32.mrf.mxu0
  %v707 = vadd.f32 %v618, %v706
  %708 = vmatmul.f32.gmra.mxu0 %v536
  %v709 = vpop.f32.mrf.mxu0
  %v710 = vadd.f32 %v621, %v709
  %711 = vmatmul.f32.gmra.mxu0 %v538
  %v712 = vpop.f32.mrf.mxu0
  %v713 = vadd.f32 %v624, %v712
  %714 = vmatmul.f32.gmra.mxu0 %v540
  %v715 = vpop.f32.mrf.mxu0
  %v716 = vadd.f32 %v627, %v715
  %717 = vmatmul.f32.gmra.mxu0 %v542
  %v718 = vpop.f32.mrf.mxu0
  %v719 = vadd.f32 %v630, %v718
  %720 = vmatmul.f32.gmra.mxu0 %v544
  %v721 = vpop.f32.mrf.mxu0
  %v722 = vadd.f32 %v633, %v721
  %723 = vmatmul.f32.gmra.mxu0 %v546
  %v724 = vpop.f32.mrf.mxu0
  %v725 = vadd.f32 %v636, %v724
  %726 = vmatmul.f32.gmra.mxu0 %v548
  %v727 = vpop.f32.mrf.mxu0
  %v728 = vadd.f32 %v639, %v727
  %729 = vmatmul.f32.gmra.mxu0 %v550
  %v730 = vpop.f32.mrf.mxu0
  %v731 = vadd.f32 %v642, %v730
  %732 = vmatmul.f32.gmra.mxu0 %v552
  %v733 = vpop.f32.mrf.mxu0
  %v734 = vadd.f32 %v645, %v733
  %735 = vdwg.mxu0
  %v736 = vld [vmem:[%s2] sm:$0xff]
  %v737 = vld [vmem:[%s2 + $0x8] sm:$0xff]
  %v738 = vld [vmem:[%s2 + $0x10] sm:$0xff]
  %v739 = vld [vmem:[%s2 + $0x18] sm:$0xff]
  %v740 = vld [vmem:[%s2 + $0x20] sm:$0xff]
  %v741 = vld [vmem:[%s2 + $0x28] sm:$0xff]
  %v742 = vld [vmem:[%s2 + $0x30] sm:$0xff]
  %v743 = vld [vmem:[%s2 + $0x38] sm:$0xff]
  %v744 = vld [vmem:[%s2 + $0x40] sm:$0xff]
  %v745 = vld [vmem:[%s2 + $0x48] sm:$0xff]
  %v746 = vld [vmem:[%s2 + $0x50] sm:$0xff]
  %v747 = vld [vmem:[%s2 + $0x58] sm:$0xff]
  %v748 = vld [vmem:[%s2 + $0x60] sm:$0xff]
  %v749 = vld [vmem:[%s2 + $0x68] sm:$0xff]
  %v750 = vld [vmem:[%s2 + $0x70] sm:$0xff]
  %v751 = vld [vmem:[%s2 + $0x78] sm:$0xff]
  %v752 = vld [vmem:[%s2 + $0x80] sm:$0xff]
  %v753 = vld [vmem:[%s2 + $0x88] sm:$0xf]
  %v755 = vsel %vm554, %v753, 0
  %757 = vmatpush.msra.mxu0 %v751
  %758 = vmatpush.msra.mxu0 %v750
  %759 = vmatpush.msra.mxu0 %v749
  %760 = vmatpush.msra.mxu0 %v748
  %761 = vmatpush.msra.mxu0 %v747
  %762 = vmatpush.msra.mxu0 %v746
  %763 = vmatpush.msra.mxu0 %v745
  %764 = vmatpush.msra.mxu0 %v744
  %765 = vmatpush.msra.mxu0 %v743
  %766 = vmatpush.msra.mxu0 %v742
  %767 = vmatpush.msra.mxu0 %v741
  %768 = vmatpush.msra.mxu0 %v740
  %769 = vmatpush.msra.mxu0 %v739
  %770 = vmatpush.msra.mxu0 %v738
  %771 = vmatpush.msra.mxu0 %v737
  %772 = vmatpush.msra.mxu0 %v736
  %773 = vmatmul.f32.gmra.mxu0 %v463
  %v774 = vpop.f32.mrf.mxu0
  %v775 = vadd.f32 0.0, %v774
  %776 = vmatmul.f32.gmra.mxu0 %v464
  %v777 = vpop.f32.mrf.mxu0
  %v778 = vadd.f32 0.0, %v777
  %779 = vmatmul.f32.gmra.mxu0 %v465
  %v780 = vpop.f32.mrf.mxu0
  %v781 = vadd.f32 0.0, %v780
  %782 = vmatmul.f32.gmra.mxu0 %v466
  %v783 = vpop.f32.mrf.mxu0
  %v784 = vadd.f32 0.0, %v783
  %785 = vmatmul.f32.gmra.mxu0 %v467
  %v786 = vpop.f32.mrf.mxu0
  %v787 = vadd.f32 0.0, %v786
  %788 = vmatmul.f32.gmra.mxu0 %v468
  %v789 = vpop.f32.mrf.mxu0
  %v790 = vadd.f32 0.0, %v789
  %791 = vmatmul.f32.gmra.mxu0 %v469
  %v792 = vpop.f32.mrf.mxu0
  %v793 = vadd.f32 0.0, %v792
  %794 = vmatmul.f32.gmra.mxu0 %v470
  %v795 = vpop.f32.mrf.mxu0
  %v796 = vadd.f32 0.0, %v795
  %797 = vmatmul.f32.gmra.mxu0 %v471
  %v798 = vpop.f32.mrf.mxu0
  %v799 = vadd.f32 0.0, %v798
  %800 = vmatmul.f32.gmra.mxu0 %v472
  %v801 = vpop.f32.mrf.mxu0
  %v802 = vadd.f32 0.0, %v801
  %803 = vmatmul.f32.gmra.mxu0 %v473
  %v804 = vpop.f32.mrf.mxu0
  %v805 = vadd.f32 0.0, %v804
  %806 = vmatmul.f32.gmra.mxu0 %v474
  %v807 = vpop.f32.mrf.mxu0
  %v808 = vadd.f32 0.0, %v807
  %809 = vmatmul.f32.gmra.mxu0 %v475
  %v810 = vpop.f32.mrf.mxu0
  %v811 = vadd.f32 0.0, %v810
  %812 = vmatmul.f32.gmra.mxu0 %v476
  %v813 = vpop.f32.mrf.mxu0
  %v814 = vadd.f32 0.0, %v813
  %815 = vmatmul.f32.gmra.mxu0 %v477
  %v816 = vpop.f32.mrf.mxu0
  %v817 = vadd.f32 0.0, %v816
  %818 = vmatmul.f32.gmra.mxu0 %v478
  %v819 = vpop.f32.mrf.mxu0
  %v820 = vadd.f32 0.0, %v819
  %821 = vmatmul.f32.gmra.mxu0 %v479
  %v822 = vpop.f32.mrf.mxu0
  %v823 = vadd.f32 0.0, %v822
  %824 = vmatmul.f32.gmra.mxu0 %v480
  %v825 = vpop.f32.mrf.mxu0
  %v826 = vadd.f32 0.0, %v825
  %827 = vmatmul.f32.gmra.mxu0 %v481
  %v828 = vpop.f32.mrf.mxu0
  %v829 = vadd.f32 0.0, %v828
  %830 = vmatmul.f32.gmra.mxu0 %v482
  %v831 = vpop.f32.mrf.mxu0
  %v832 = vadd.f32 0.0, %v831
  %833 = vmatmul.f32.gmra.mxu0 %v483
  %v834 = vpop.f32.mrf.mxu0
  %v835 = vadd.f32 0.0, %v834
  %836 = vmatmul.f32.gmra.mxu0 %v484
  %v837 = vpop.f32.mrf.mxu0
  %v838 = vadd.f32 0.0, %v837
  %839 = vmatmul.f32.gmra.mxu0 %v485
  %v840 = vpop.f32.mrf.mxu0
  %v841 = vadd.f32 0.0, %v840
  %842 = vmatmul.f32.gmra.mxu0 %v486
  %v843 = vpop.f32.mrf.mxu0
  %v844 = vadd.f32 0.0, %v843
  %845 = vdwg.mxu0
  %846 = vmatpush.msra.mxu0 0.0
  %847 = vmatpush.msra.mxu0 0.0
  %848 = vmatpush.msra.mxu0 0.0
  %849 = vmatpush.msra.mxu0 0.0
  %850 = vmatpush.msra.mxu0 0.0
  %851 = vmatpush.msra.mxu0 0.0
  %852 = vmatpush.msra.mxu0 0.0
  %853 = vmatpush.msra.mxu0 0.0
  %854 = vmatpush.msra.mxu0 0.0
  %855 = vmatpush.msra.mxu0 0.0
  %856 = vmatpush.msra.mxu0 0.0
  %857 = vmatpush.msra.mxu0 0.0
  %858 = vmatpush.msra.mxu0 0.0
  %859 = vmatpush.msra.mxu0 0.0
  %860 = vmatpush.msra.mxu0 %v755
  %861 = vmatpush.msra.mxu0 %v752
  %862 = vmatmul.f32.gmra.mxu0 %v506
  %v863 = vpop.f32.mrf.mxu0
  %v864 = vadd.f32 %v775, %v863
  %865 = vmatmul.f32.gmra.mxu0 %v508
  %v866 = vpop.f32.mrf.mxu0
  %v867 = vadd.f32 %v778, %v866
  %868 = vmatmul.f32.gmra.mxu0 %v510
  %v869 = vpop.f32.mrf.mxu0
  %v870 = vadd.f32 %v781, %v869
  %871 = vmatmul.f32.gmra.mxu0 %v512
  %v872 = vpop.f32.mrf.mxu0
  %v873 = vadd.f32 %v784, %v872
  %874 = vmatmul.f32.gmra.mxu0 %v514
  %v875 = vpop.f32.mrf.mxu0
  %v876 = vadd.f32 %v787, %v875
  %877 = vmatmul.f32.gmra.mxu0 %v516
  %v878 = vpop.f32.mrf.mxu0
  %v879 = vadd.f32 %v790, %v878
  %880 = vmatmul.f32.gmra.mxu0 %v518
  %v881 = vpop.f32.mrf.mxu0
  %v882 = vadd.f32 %v793, %v881
  %883 = vmatmul.f32.gmra.mxu0 %v520
  %v884 = vpop.f32.mrf.mxu0
  %v885 = vadd.f32 %v796, %v884
  %886 = vmatmul.f32.gmra.mxu0 %v522
  %v887 = vpop.f32.mrf.mxu0
  %v888 = vadd.f32 %v799, %v887
  %889 = vmatmul.f32.gmra.mxu0 %v524
  %v890 = vpop.f32.mrf.mxu0
  %v891 = vadd.f32 %v802, %v890
  %892 = vmatmul.f32.gmra.mxu0 %v526
  %v893 = vpop.f32.mrf.mxu0
  %v894 = vadd.f32 %v805, %v893
  %895 = vmatmul.f32.gmra.mxu0 %v528
  %v896 = vpop.f32.mrf.mxu0
  %v897 = vadd.f32 %v808, %v896
  %898 = vmatmul.f32.gmra.mxu0 %v530
  %v899 = vpop.f32.mrf.mxu0
  %v900 = vadd.f32 %v811, %v899
  %901 = vmatmul.f32.gmra.mxu0 %v532
  %v902 = vpop.f32.mrf.mxu0
  %v903 = vadd.f32 %v814, %v902
  %904 = vmatmul.f32.gmra.mxu0 %v534
  %v905 = vpop.f32.mrf.mxu0
  %v906 = vadd.f32 %v817, %v905
  %907 = vmatmul.f32.gmra.mxu0 %v536
  %v908 = vpop.f32.mrf.mxu0
  %v909 = vadd.f32 %v820, %v908
  %910 = vmatmul.f32.gmra.mxu0 %v538
  %v911 = vpop.f32.mrf.mxu0
  %v912 = vadd.f32 %v823, %v911
  %913 = vmatmul.f32.gmra.mxu0 %v540
  %v914 = vpop.f32.mrf.mxu0
  %v915 = vadd.f32 %v826, %v914
  %916 = vmatmul.f32.gmra.mxu0 %v542
  %v917 = vpop.f32.mrf.mxu0
  %v918 = vadd.f32 %v829, %v917
  %919 = vmatmul.f32.gmra.mxu0 %v544
  %v920 = vpop.f32.mrf.mxu0
  %v921 = vadd.f32 %v832, %v920
  %922 = vmatmul.f32.gmra.mxu0 %v546
  %v923 = vpop.f32.mrf.mxu0
  %v924 = vadd.f32 %v835, %v923
  %925 = vmatmul.f32.gmra.mxu0 %v548
  %v926 = vpop.f32.mrf.mxu0
  %v927 = vadd.f32 %v838, %v926
  %928 = vmatmul.f32.gmra.mxu0 %v550
  %v929 = vpop.f32.mrf.mxu0
  %v930 = vadd.f32 %v841, %v929
  %931 = vmatmul.f32.gmra.mxu0 %v552
  %v932 = vpop.f32.mrf.mxu0
  %v933 = vadd.f32 %v844, %v932
  %934 = vdwg.mxu0
  %v935 = vmax.f32 %v665, %v864
  %v936 = vmax.f32 %v668, %v867
  %v937 = vmax.f32 %v671, %v870
  %v938 = vmax.f32 %v674, %v873
  %v939 = vmax.f32 %v677, %v876
  %v940 = vmax.f32 %v680, %v879
  %v941 = vmax.f32 %v683, %v882
  %v942 = vmax.f32 %v686, %v885
  %v943 = vmax.f32 %v689, %v888
  %v944 = vmax.f32 %v692, %v891
  %v945 = vmax.f32 %v695, %v894
  %v946 = vmax.f32 %v698, %v897
  %v947 = vmax.f32 %v701, %v900
  %v948 = vmax.f32 %v704, %v903
  %v949 = vmax.f32 %v707, %v906
  %v950 = vmax.f32 %v710, %v909
  %v951 = vmax.f32 %v713, %v912
  %v952 = vmax.f32 %v716, %v915
  %v953 = vmax.f32 %v719, %v918
  %v954 = vmax.f32 %v722, %v921
  %v955 = vmax.f32 %v725, %v924
  %v956 = vmax.f32 %v728, %v927
  %v957 = vmax.f32 %v731, %v930
  %v958 = vmax.f32 %v734, %v933
  %v959 = vld [vmem:[%s3] sm:$0x1]
  %v961 = vperm.slane %v959, 0
  %v963 = vadd.f32 %v935, %v961
  %v964 = vadd.f32 %v936, %v961
  %v965 = vadd.f32 %v937, %v961
  %v966 = vadd.f32 %v938, %v961
  %v967 = vadd.f32 %v939, %v961
  %v968 = vadd.f32 %v940, %v961
  %v969 = vadd.f32 %v941, %v961
  %v970 = vadd.f32 %v942, %v961
  %v971 = vadd.f32 %v943, %v961
  %v972 = vadd.f32 %v944, %v961
  %v973 = vadd.f32 %v945, %v961
  %v974 = vadd.f32 %v946, %v961
  %v975 = vadd.f32 %v947, %v961
  %v976 = vadd.f32 %v948, %v961
  %v977 = vadd.f32 %v949, %v961
  %v978 = vadd.f32 %v950, %v961
  %v979 = vadd.f32 %v951, %v961
  %v980 = vadd.f32 %v952, %v961
  %v981 = vadd.f32 %v953, %v961
  %v982 = vadd.f32 %v954, %v961
  %v983 = vadd.f32 %v955, %v961
  %v984 = vadd.f32 %v956, %v961
  %v985 = vadd.f32 %v957, %v961
  %v986 = vadd.f32 %v958, %v961
  %v987 = vmax.f32 %v963, %v964
  %v988 = vmax.f32 %v965, %v966
  %v989 = vmax.f32 %v967, %v968
  %v990 = vmax.f32 %v969, %v970
  %v991 = vmax.f32 %v971, %v972
  %v992 = vmax.f32 %v973, %v974
  %v993 = vmax.f32 %v975, %v976
  %v994 = vmax.f32 %v977, %v978
  %v995 = vmax.f32 %v979, %v980
  %v996 = vmax.f32 %v981, %v982
  %v997 = vmax.f32 %v983, %v984
  %v998 = vmax.f32 %v985, %v986
  %v999 = vmax.f32 %v987, 0.0
  %v1000 = vmax.f32 %v988, 0.0
  %v1001 = vmax.f32 %v989, 0.0
  %v1002 = vmax.f32 %v990, 0.0
  %v1003 = vmax.f32 %v991, 0.0
  %v1004 = vmax.f32 %v992, 0.0
  %v1005 = vmax.f32 %v993, 0.0
  %v1006 = vmax.f32 %v994, 0.0
  %v1007 = vmax.f32 %v995, 0.0
  %v1008 = vmax.f32 %v996, 0.0
  %v1009 = vmax.f32 %v997, 0.0
  %v1010 = vmax.f32 %v998, 0.0
  %1019 = vrot.lane.b32.xlu0 %v1000, 72
  %v1020 = vpop.permute.xlu0 %1019
  %1021 = vrot.lane.b32.xlu0 %v1001, 72
  %v1022 = vpop.permute.xlu0 %1021
  %1023 = vrot.lane.b32.xlu0 %v1002, 72
  %v1024 = vpop.permute.xlu0 %1023
  %1025 = vrot.lane.b32.xlu0 %v1003, 72
  %v1026 = vpop.permute.xlu0 %1025
  %1027 = vrot.lane.b32.xlu0 %v1004, 72
  %v1028 = vpop.permute.xlu0 %1027
  %1029 = vrot.lane.b32.xlu0 %v1005, 72
  %v1030 = vpop.permute.xlu0 %1029
  %1031 = vrot.lane.b32.xlu0 %v1006, 72
  %v1032 = vpop.permute.xlu0 %1031
  %1033 = vrot.lane.b32.xlu0 %v1007, 72
  %v1034 = vpop.permute.xlu0 %1033
  %1044 = vrot.lane.b32.xlu0 %v1001, 16
  %v1045 = vpop.permute.xlu0 %1044
  %1046 = vrot.lane.b32.xlu0 %v1002, 16
  %v1047 = vpop.permute.xlu0 %1046
  %1048 = vrot.lane.b32.xlu0 %v1003, 16
  %v1049 = vpop.permute.xlu0 %1048
  %1050 = vrot.lane.b32.xlu0 %v1004, 16
  %v1051 = vpop.permute.xlu0 %1050
  %1052 = vrot.lane.b32.xlu0 %v1005, 16
  %v1053 = vpop.permute.xlu0 %1052
  %1054 = vrot.lane.b32.xlu0 %v1006, 16
  %v1055 = vpop.permute.xlu0 %1054
  %1056 = vrot.lane.b32.xlu0 %v1007, 16
  %v1057 = vpop.permute.xlu0 %1056
  %1058 = vrot.lane.b32.xlu0 %v1008, 16
  %v1059 = vpop.permute.xlu0 %1058
  %1069 = vrot.lane.b32.xlu0 %v1002, 88
  %v1070 = vpop.permute.xlu0 %1069
  %1071 = vrot.lane.b32.xlu0 %v1003, 88
  %v1072 = vpop.permute.xlu0 %1071
  %1073 = vrot.lane.b32.xlu0 %v1004, 88
  %v1074 = vpop.permute.xlu0 %1073
  %1075 = vrot.lane.b32.xlu0 %v1005, 88
  %v1076 = vpop.permute.xlu0 %1075
  %1077 = vrot.lane.b32.xlu0 %v1006, 88
  %v1078 = vpop.permute.xlu0 %1077
  %1079 = vrot.lane.b32.xlu0 %v1007, 88
  %v1080 = vpop.permute.xlu0 %1079
  %1081 = vrot.lane.b32.xlu0 %v1008, 88
  %v1082 = vpop.permute.xlu0 %1081
  %1083 = vrot.lane.b32.xlu0 %v1009, 88
  %v1084 = vpop.permute.xlu0 %1083
  %1094 = vrot.lane.b32.xlu0 %v1003, 32
  %v1095 = vpop.permute.xlu0 %1094
  %1096 = vrot.lane.b32.xlu0 %v1004, 32
  %v1097 = vpop.permute.xlu0 %1096
  %1098 = vrot.lane.b32.xlu0 %v1005, 32
  %v1099 = vpop.permute.xlu0 %1098
  %1100 = vrot.lane.b32.xlu0 %v1006, 32
  %v1101 = vpop.permute.xlu0 %1100
  %1102 = vrot.lane.b32.xlu0 %v1007, 32
  %v1103 = vpop.permute.xlu0 %1102
  %1104 = vrot.lane.b32.xlu0 %v1008, 32
  %v1105 = vpop.permute.xlu0 %1104
  %1106 = vrot.lane.b32.xlu0 %v1009, 32
  %v1107 = vpop.permute.xlu0 %1106
  %1108 = vrot.lane.b32.xlu0 %v1010, 32
  %v1109 = vpop.permute.xlu0 %1108
  %vm1118 = vcmask 588800
  %v1119 = vsel %vm1118, %v999, %v1020
  %v1120 = vsel %vm1118, %v1000, %v1022
  %v1121 = vsel %vm1118, %v1001, %v1024
  %v1122 = vsel %vm1118, %v1002, %v1026
  %v1123 = vsel %vm1118, %v1003, %v1028
  %v1124 = vsel %vm1118, %v1004, %v1030
  %v1125 = vsel %vm1118, %v1005, %v1032
  %v1126 = vsel %vm1118, %v1006, %v1034
  %vm1127 = vcmask 130048
  %v1128 = vsel %vm1127, %v1020, %v1045
  %v1129 = vsel %vm1127, %v1022, %v1047
  %v1130 = vsel %vm1127, %v1024, %v1049
  %v1131 = vsel %vm1127, %v1026, %v1051
  %v1132 = vsel %vm1127, %v1028, %v1053
  %v1133 = vsel %vm1127, %v1030, %v1055
  %v1134 = vsel %vm1127, %v1032, %v1057
  %v1135 = vsel %vm1127, %v1034, %v1059
  %vm1136 = vcmask 719872
  %v1137 = vsel %vm1136, %v1128, %v1070
  %v1138 = vsel %vm1136, %v1129, %v1072
  %v1139 = vsel %vm1136, %v1130, %v1074
  %v1140 = vsel %vm1136, %v1131, %v1076
  %v1141 = vsel %vm1136, %v1132, %v1078
  %v1142 = vsel %vm1136, %v1133, %v1080
  %v1143 = vsel %vm1136, %v1134, %v1082
  %v1144 = vsel %vm1136, %v1135, %v1084
  %vm1145 = vcmask 261120
  %v1146 = vsel %vm1145, %v1070, %v1095
  %v1147 = vsel %vm1145, %v1072, %v1097
  %v1148 = vsel %vm1145, %v1074, %v1099
  %v1149 = vsel %vm1145, %v1076, %v1101
  %v1150 = vsel %vm1145, %v1078, %v1103
  %v1151 = vsel %vm1145, %v1080, %v1105
  %v1152 = vsel %vm1145, %v1082, %v1107
  %v1153 = vsel %vm1145, %v1084, %v1109
  %v1154 = vld [vmem:[%s4] sm:$0xff]
  %v1155 = vld [vmem:[%s4 + $0x8] sm:$0xff]
  %v1156 = vld [vmem:[%s4 + $0x10] sm:$0xff]
  %v1157 = vld [vmem:[%s4 + $0x18] sm:$0xff]
  %v1158 = vld [vmem:[%s4 + $0x20] sm:$0xff]
  %v1159 = vld [vmem:[%s4 + $0x28] sm:$0xff]
  %v1160 = vld [vmem:[%s4 + $0x30] sm:$0xff]
  %v1161 = vld [vmem:[%s4 + $0x38] sm:$0xff]
  %v1162 = vld [vmem:[%s4 + $0x40] sm:$0xff]
  %v1163 = vld [vmem:[%s4 + $0x48] sm:$0xff]
  %v1164 = vld [vmem:[%s4 + $0x50] sm:$0xff]
  %v1165 = vld [vmem:[%s4 + $0x58] sm:$0xff]
  %v1166 = vld [vmem:[%s4 + $0x60] sm:$0xff]
  %v1167 = vld [vmem:[%s4 + $0x68] sm:$0xff]
  %v1168 = vld [vmem:[%s4 + $0x70] sm:$0xff]
  %v1169 = vld [vmem:[%s4 + $0x78] sm:$0xff]
  %v1170 = vld [vmem:[%s4 + $0x80] sm:$0xff]
  %v1171 = vld [vmem:[%s4 + $0x88] sm:$0xff]
  %v1172 = vld [vmem:[%s4 + $0x90] sm:$0xff]
  %v1173 = vld [vmem:[%s4 + $0x98] sm:$0xff]
  %v1174 = vld [vmem:[%s4 + $0xa0] sm:$0xff]
  %v1175 = vld [vmem:[%s4 + $0xa8] sm:$0xff]
  %v1176 = vld [vmem:[%s4 + $0xb0] sm:$0xff]
  %v1177 = vld [vmem:[%s4 + $0xb8] sm:$0xff]
  %v1178 = vld [vmem:[%s4 + $0xc0] sm:$0xff]
  %v1179 = vld [vmem:[%s4 + $0xc8] sm:$0xff]
  %v1180 = vld [vmem:[%s4 + $0xd0] sm:$0xff]
  %v1181 = vld [vmem:[%s4 + $0xd8] sm:$0xff]
  %v1182 = vld [vmem:[%s4 + $0xe0] sm:$0xff]
  %v1183 = vld [vmem:[%s4 + $0xe8] sm:$0xff]
  %v1184 = vld [vmem:[%s4 + $0xf0] sm:$0xff]
  %v1185 = vld [vmem:[%s4 + $0xf8] sm:$0xff]
  %v1186 = vld [vmem:[%s4 + $0x100] sm:$0xff]
  %v1187 = vld [vmem:[%s4 + $0x108] sm:$0xff]
  %v1188 = vld [vmem:[%s4 + $0x110] sm:$0xff]
  %v1189 = vld [vmem:[%s4 + $0x118] sm:$0xff]
  %v1190 = vld [vmem:[%s4 + $0x120] sm:$0xff]
  %v1191 = vld [vmem:[%s4 + $0x128] sm:$0xff]
  %v1192 = vld [vmem:[%s4 + $0x130] sm:$0xff]
  %v1193 = vld [vmem:[%s4 + $0x138] sm:$0xff]
  %v1194 = vld [vmem:[%s4 + $0x140] sm:$0xff]
  %v1195 = vld [vmem:[%s4 + $0x148] sm:$0xff]
  %v1196 = vld [vmem:[%s4 + $0x150] sm:$0xff]
  %v1197 = vld [vmem:[%s4 + $0x158] sm:$0xff]
  %v1198 = vld [vmem:[%s4 + $0x160] sm:$0xff]
  %vm1199 = vcmask 850944
  %v1201 = vsel %vm1199, %v1146, 0
  %v1204 = vsel %vm1199, %v1147, 0
  %v1207 = vsel %vm1199, %v1148, 0
  %v1210 = vsel %vm1199, %v1149, 0
  %v1213 = vsel %vm1199, %v1150, 0
  %v1216 = vsel %vm1199, %v1151, 0
  %v1219 = vsel %vm1199, %v1152, 0
  %v1222 = vsel %vm1199, %v1153, 0
  %1224 = vmatpush.msra.mxu0 %v1169
  %1225 = vmatpush.msra.mxu0 %v1168
  %1226 = vmatpush.msra.mxu0 %v1167
  %1227 = vmatpush.msra.mxu0 %v1166
  %1228 = vmatpush.msra.mxu0 %v1165
  %1229 = vmatpush.msra.mxu0 %v1164
  %1230 = vmatpush.msra.mxu0 %v1163
  %1231 = vmatpush.msra.mxu0 %v1162
  %1232 = vmatpush.msra.mxu0 %v1161
  %1233 = vmatpush.msra.mxu0 %v1160
  %1234 = vmatpush.msra.mxu0 %v1159
  %1235 = vmatpush.msra.mxu0 %v1158
  %1236 = vmatpush.msra.mxu0 %v1157
  %1237 = vmatpush.msra.mxu0 %v1156
  %1238 = vmatpush.msra.mxu0 %v1155
  %1239 = vmatpush.msra.mxu0 %v1154
  %1240 = vmatmul.f32.gmra.mxu0 %v1119
  %v1241 = vpop.f32.mrf.mxu0
  %v1242 = vadd.f32 0.0, %v1241
  %1243 = vmatmul.f32.gmra.mxu0 %v1120
  %v1244 = vpop.f32.mrf.mxu0
  %v1245 = vadd.f32 0.0, %v1244
  %1246 = vmatmul.f32.gmra.mxu0 %v1121
  %v1247 = vpop.f32.mrf.mxu0
  %v1248 = vadd.f32 0.0, %v1247
  %1249 = vmatmul.f32.gmra.mxu0 %v1122
  %v1250 = vpop.f32.mrf.mxu0
  %v1251 = vadd.f32 0.0, %v1250
  %1252 = vmatmul.f32.gmra.mxu0 %v1123
  %v1253 = vpop.f32.mrf.mxu0
  %v1254 = vadd.f32 0.0, %v1253
  %1255 = vmatmul.f32.gmra.mxu0 %v1124
  %v1256 = vpop.f32.mrf.mxu0
  %v1257 = vadd.f32 0.0, %v1256
  %1258 = vmatmul.f32.gmra.mxu0 %v1125
  %v1259 = vpop.f32.mrf.mxu0
  %v1260 = vadd.f32 0.0, %v1259
  %1261 = vmatmul.f32.gmra.mxu0 %v1126
  %v1262 = vpop.f32.mrf.mxu0
  %v1263 = vadd.f32 0.0, %v1262
  %1264 = vdwg.mxu0
  %1265 = vmatpush.msra.mxu0 %v1185
  %1266 = vmatpush.msra.mxu0 %v1184
  %1267 = vmatpush.msra.mxu0 %v1183
  %1268 = vmatpush.msra.mxu0 %v1182
  %1269 = vmatpush.msra.mxu0 %v1181
  %1270 = vmatpush.msra.mxu0 %v1180
  %1271 = vmatpush.msra.mxu0 %v1179
  %1272 = vmatpush.msra.mxu0 %v1178
  %1273 = vmatpush.msra.mxu0 %v1177
  %1274 = vmatpush.msra.mxu0 %v1176
  %1275 = vmatpush.msra.mxu0 %v1175
  %1276 = vmatpush.msra.mxu0 %v1174
  %1277 = vmatpush.msra.mxu0 %v1173
  %1278 = vmatpush.msra.mxu0 %v1172
  %1279 = vmatpush.msra.mxu0 %v1171
  %1280 = vmatpush.msra.mxu0 %v1170
  %1281 = vmatmul.f32.gmra.mxu0 %v1137
  %v1282 = vpop.f32.mrf.mxu0
  %v1283 = vadd.f32 %v1242, %v1282
  %1284 = vmatmul.f32.gmra.mxu0 %v1138
  %v1285 = vpop.f32.mrf.mxu0
  %v1286 = vadd.f32 %v1245, %v1285
  %1287 = vmatmul.f32.gmra.mxu0 %v1139
  %v1288 = vpop.f32.mrf.mxu0
  %v1289 = vadd.f32 %v1248, %v1288
  %1290 = vmatmul.f32.gmra.mxu0 %v1140
  %v1291 = vpop.f32.mrf.mxu0
  %v1292 = vadd.f32 %v1251, %v1291
  %1293 = vmatmul.f32.gmra.mxu0 %v1141
  %v1294 = vpop.f32.mrf.mxu0
  %v1295 = vadd.f32 %v1254, %v1294
  %1296 = vmatmul.f32.gmra.mxu0 %v1142
  %v1297 = vpop.f32.mrf.mxu0
  %v1298 = vadd.f32 %v1257, %v1297
  %1299 = vmatmul.f32.gmra.mxu0 %v1143
  %v1300 = vpop.f32.mrf.mxu0
  %v1301 = vadd.f32 %v1260, %v1300
  %1302 = vmatmul.f32.gmra.mxu0 %v1144
  %v1303 = vpop.f32.mrf.mxu0
  %v1304 = vadd.f32 %v1263, %v1303
  %1305 = vdwg.mxu0
  %1306 = vmatpush.msra.mxu0 0.0
  %1307 = vmatpush.msra.mxu0 0.0
  %1308 = vmatpush.msra.mxu0 0.0
  %1309 = vmatpush.msra.mxu0 %v1198
  %1310 = vmatpush.msra.mxu0 %v1197
  %1311 = vmatpush.msra.mxu0 %v1196
  %1312 = vmatpush.msra.mxu0 %v1195
  %1313 = vmatpush.msra.mxu0 %v1194
  %1314 = vmatpush.msra.mxu0 %v1193
  %1315 = vmatpush.msra.mxu0 %v1192
  %1316 = vmatpush.msra.mxu0 %v1191
  %1317 = vmatpush.msra.mxu0 %v1190
  %1318 = vmatpush.msra.mxu0 %v1189
  %1319 = vmatpush.msra.mxu0 %v1188
  %1320 = vmatpush.msra.mxu0 %v1187
  %1321 = vmatpush.msra.mxu0 %v1186
  %1322 = vmatmul.f32.gmra.mxu0 %v1201
  %v1323 = vpop.f32.mrf.mxu0
  %v1324 = vadd.f32 %v1283, %v1323
  %1325 = vmatmul.f32.gmra.mxu0 %v1204
  %v1326 = vpop.f32.mrf.mxu0
  %v1327 = vadd.f32 %v1286, %v1326
  %1328 = vmatmul.f32.gmra.mxu0 %v1207
  %v1329 = vpop.f32.mrf.mxu0
  %v1330 = vadd.f32 %v1289, %v1329
  %1331 = vmatmul.f32.gmra.mxu0 %v1210
  %v1332 = vpop.f32.mrf.mxu0
  %v1333 = vadd.f32 %v1292, %v1332
  %1334 = vmatmul.f32.gmra.mxu0 %v1213
  %v1335 = vpop.f32.mrf.mxu0
  %v1336 = vadd.f32 %v1295, %v1335
  %1337 = vmatmul.f32.gmra.mxu0 %v1216
  %v1338 = vpop.f32.mrf.mxu0
  %v1339 = vadd.f32 %v1298, %v1338
  %1340 = vmatmul.f32.gmra.mxu0 %v1219
  %v1341 = vpop.f32.mrf.mxu0
  %v1342 = vadd.f32 %v1301, %v1341
  %1343 = vmatmul.f32.gmra.mxu0 %v1222
  %v1344 = vpop.f32.mrf.mxu0
  %v1345 = vadd.f32 %v1304, %v1344
  %1346 = vdwg.mxu0
  %v1347 = vld [vmem:[%s5] sm:$0xff]
  %v1348 = vld [vmem:[%s5 + $0x8] sm:$0xff]
  %v1349 = vld [vmem:[%s5 + $0x10] sm:$0xff]
  %v1350 = vld [vmem:[%s5 + $0x18] sm:$0xff]
  %v1351 = vld [vmem:[%s5 + $0x20] sm:$0xff]
  %v1352 = vld [vmem:[%s5 + $0x28] sm:$0xff]
  %v1353 = vld [vmem:[%s5 + $0x30] sm:$0xff]
  %v1354 = vld [vmem:[%s5 + $0x38] sm:$0xff]
  %v1355 = vld [vmem:[%s5 + $0x40] sm:$0xff]
  %v1356 = vld [vmem:[%s5 + $0x48] sm:$0xff]
  %v1357 = vld [vmem:[%s5 + $0x50] sm:$0xff]
  %v1358 = vld [vmem:[%s5 + $0x58] sm:$0xff]
  %v1359 = vld [vmem:[%s5 + $0x60] sm:$0xff]
  %v1360 = vld [vmem:[%s5 + $0x68] sm:$0xff]
  %v1361 = vld [vmem:[%s5 + $0x70] sm:$0xff]
  %v1362 = vld [vmem:[%s5 + $0x78] sm:$0xff]
  %v1363 = vld [vmem:[%s5 + $0x80] sm:$0xff]
  %v1364 = vld [vmem:[%s5 + $0x88] sm:$0xff]
  %v1365 = vld [vmem:[%s5 + $0x90] sm:$0xff]
  %v1366 = vld [vmem:[%s5 + $0x98] sm:$0xff]
  %v1367 = vld [vmem:[%s5 + $0xa0] sm:$0xff]
  %v1368 = vld [vmem:[%s5 + $0xa8] sm:$0xff]
  %v1369 = vld [vmem:[%s5 + $0xb0] sm:$0xff]
  %v1370 = vld [vmem:[%s5 + $0xb8] sm:$0xff]
  %v1371 = vld [vmem:[%s5 + $0xc0] sm:$0xff]
  %v1372 = vld [vmem:[%s5 + $0xc8] sm:$0xff]
  %v1373 = vld [vmem:[%s5 + $0xd0] sm:$0xff]
  %v1374 = vld [vmem:[%s5 + $0xd8] sm:$0xff]
  %v1375 = vld [vmem:[%s5 + $0xe0] sm:$0xff]
  %v1376 = vld [vmem:[%s5 + $0xe8] sm:$0xff]
  %v1377 = vld [vmem:[%s5 + $0xf0] sm:$0xff]
  %v1378 = vld [vmem:[%s5 + $0xf8] sm:$0xff]
  %v1379 = vld [vmem:[%s5 + $0x100] sm:$0xff]
  %v1380 = vld [vmem:[%s5 + $0x108] sm:$0xff]
  %v1381 = vld [vmem:[%s5 + $0x110] sm:$0xff]
  %v1382 = vld [vmem:[%s5 + $0x118] sm:$0xff]
  %v1383 = vld [vmem:[%s5 + $0x120] sm:$0xff]
  %v1384 = vld [vmem:[%s5 + $0x128] sm:$0xff]
  %v1385 = vld [vmem:[%s5 + $0x130] sm:$0xff]
  %v1386 = vld [vmem:[%s5 + $0x138] sm:$0xff]
  %v1387 = vld [vmem:[%s5 + $0x140] sm:$0xff]
  %v1388 = vld [vmem:[%s5 + $0x148] sm:$0xff]
  %v1389 = vld [vmem:[%s5 + $0x150] sm:$0xff]
  %v1390 = vld [vmem:[%s5 + $0x158] sm:$0xff]
  %v1391 = vld [vmem:[%s5 + $0x160] sm:$0xff]
  %1392 = vmatpush.msra.mxu0 %v1362
  %1393 = vmatpush.msra.mxu0 %v1361
  %1394 = vmatpush.msra.mxu0 %v1360
  %1395 = vmatpush.msra.mxu0 %v1359
  %1396 = vmatpush.msra.mxu0 %v1358
  %1397 = vmatpush.msra.mxu0 %v1357
  %1398 = vmatpush.msra.mxu0 %v1356
  %1399 = vmatpush.msra.mxu0 %v1355
  %1400 = vmatpush.msra.mxu0 %v1354
  %1401 = vmatpush.msra.mxu0 %v1353
  %1402 = vmatpush.msra.mxu0 %v1352
  %1403 = vmatpush.msra.mxu0 %v1351
  %1404 = vmatpush.msra.mxu0 %v1350
  %1405 = vmatpush.msra.mxu0 %v1349
  %1406 = vmatpush.msra.mxu0 %v1348
  %1407 = vmatpush.msra.mxu0 %v1347
  %1408 = vmatmul.f32.gmra.mxu0 %v1119
  %v1409 = vpop.f32.mrf.mxu0
  %v1410 = vadd.f32 0.0, %v1409
  %1411 = vmatmul.f32.gmra.mxu0 %v1120
  %v1412 = vpop.f32.mrf.mxu0
  %v1413 = vadd.f32 0.0, %v1412
  %1414 = vmatmul.f32.gmra.mxu0 %v1121
  %v1415 = vpop.f32.mrf.mxu0
  %v1416 = vadd.f32 0.0, %v1415
  %1417 = vmatmul.f32.gmra.mxu0 %v1122
  %v1418 = vpop.f32.mrf.mxu0
  %v1419 = vadd.f32 0.0, %v1418
  %1420 = vmatmul.f32.gmra.mxu0 %v1123
  %v1421 = vpop.f32.mrf.mxu0
  %v1422 = vadd.f32 0.0, %v1421
  %1423 = vmatmul.f32.gmra.mxu0 %v1124
  %v1424 = vpop.f32.mrf.mxu0
  %v1425 = vadd.f32 0.0, %v1424
  %1426 = vmatmul.f32.gmra.mxu0 %v1125
  %v1427 = vpop.f32.mrf.mxu0
  %v1428 = vadd.f32 0.0, %v1427
  %1429 = vmatmul.f32.gmra.mxu0 %v1126
  %v1430 = vpop.f32.mrf.mxu0
  %v1431 = vadd.f32 0.0, %v1430
  %1432 = vdwg.mxu0
  %1433 = vmatpush.msra.mxu0 %v1378
  %1434 = vmatpush.msra.mxu0 %v1377
  %1435 = vmatpush.msra.mxu0 %v1376
  %1436 = vmatpush.msra.mxu0 %v1375
  %1437 = vmatpush.msra.mxu0 %v1374
  %1438 = vmatpush.msra.mxu0 %v1373
  %1439 = vmatpush.msra.mxu0 %v1372
  %1440 = vmatpush.msra.mxu0 %v1371
  %1441 = vmatpush.msra.mxu0 %v1370
  %1442 = vmatpush.msra.mxu0 %v1369
  %1443 = vmatpush.msra.mxu0 %v1368
  %1444 = vmatpush.msra.mxu0 %v1367
  %1445 = vmatpush.msra.mxu0 %v1366
  %1446 = vmatpush.msra.mxu0 %v1365
  %1447 = vmatpush.msra.mxu0 %v1364
  %1448 = vmatpush.msra.mxu0 %v1363
  %1449 = vmatmul.f32.gmra.mxu0 %v1137
  %v1450 = vpop.f32.mrf.mxu0
  %v1451 = vadd.f32 %v1410, %v1450
  %1452 = vmatmul.f32.gmra.mxu0 %v1138
  %v1453 = vpop.f32.mrf.mxu0
  %v1454 = vadd.f32 %v1413, %v1453
  %1455 = vmatmul.f32.gmra.mxu0 %v1139
  %v1456 = vpop.f32.mrf.mxu0
  %v1457 = vadd.f32 %v1416, %v1456
  %1458 = vmatmul.f32.gmra.mxu0 %v1140
  %v1459 = vpop.f32.mrf.mxu0
  %v1460 = vadd.f32 %v1419, %v1459
  %1461 = vmatmul.f32.gmra.mxu0 %v1141
  %v1462 = vpop.f32.mrf.mxu0
  %v1463 = vadd.f32 %v1422, %v1462
  %1464 = vmatmul.f32.gmra.mxu0 %v1142
  %v1465 = vpop.f32.mrf.mxu0
  %v1466 = vadd.f32 %v1425, %v1465
  %1467 = vmatmul.f32.gmra.mxu0 %v1143
  %v1468 = vpop.f32.mrf.mxu0
  %v1469 = vadd.f32 %v1428, %v1468
  %1470 = vmatmul.f32.gmra.mxu0 %v1144
  %v1471 = vpop.f32.mrf.mxu0
  %v1472 = vadd.f32 %v1431, %v1471
  %1473 = vdwg.mxu0
  %1474 = vmatpush.msra.mxu0 0.0
  %1475 = vmatpush.msra.mxu0 0.0
  %1476 = vmatpush.msra.mxu0 0.0
  %1477 = vmatpush.msra.mxu0 %v1391
  %1478 = vmatpush.msra.mxu0 %v1390
  %1479 = vmatpush.msra.mxu0 %v1389
  %1480 = vmatpush.msra.mxu0 %v1388
  %1481 = vmatpush.msra.mxu0 %v1387
  %1482 = vmatpush.msra.mxu0 %v1386
  %1483 = vmatpush.msra.mxu0 %v1385
  %1484 = vmatpush.msra.mxu0 %v1384
  %1485 = vmatpush.msra.mxu0 %v1383
  %1486 = vmatpush.msra.mxu0 %v1382
  %1487 = vmatpush.msra.mxu0 %v1381
  %1488 = vmatpush.msra.mxu0 %v1380
  %1489 = vmatpush.msra.mxu0 %v1379
  %1490 = vmatmul.f32.gmra.mxu0 %v1201
  %v1491 = vpop.f32.mrf.mxu0
  %v1492 = vadd.f32 %v1451, %v1491
  %1493 = vmatmul.f32.gmra.mxu0 %v1204
  %v1494 = vpop.f32.mrf.mxu0
  %v1495 = vadd.f32 %v1454, %v1494
  %1496 = vmatmul.f32.gmra.mxu0 %v1207
  %v1497 = vpop.f32.mrf.mxu0
  %v1498 = vadd.f32 %v1457, %v1497
  %1499 = vmatmul.f32.gmra.mxu0 %v1210
  %v1500 = vpop.f32.mrf.mxu0
  %v1501 = vadd.f32 %v1460, %v1500
  %1502 = vmatmul.f32.gmra.mxu0 %v1213
  %v1503 = vpop.f32.mrf.mxu0
  %v1504 = vadd.f32 %v1463, %v1503
  %1505 = vmatmul.f32.gmra.mxu0 %v1216
  %v1506 = vpop.f32.mrf.mxu0
  %v1507 = vadd.f32 %v1466, %v1506
  %1508 = vmatmul.f32.gmra.mxu0 %v1219
  %v1509 = vpop.f32.mrf.mxu0
  %v1510 = vadd.f32 %v1469, %v1509
  %1511 = vmatmul.f32.gmra.mxu0 %v1222
  %v1512 = vpop.f32.mrf.mxu0
  %v1513 = vadd.f32 %v1472, %v1512
  %1514 = vdwg.mxu0
  %v1515 = vmax.f32 %v1324, %v1492
  %v1516 = vmax.f32 %v1327, %v1495
  %v1517 = vmax.f32 %v1330, %v1498
  %v1518 = vmax.f32 %v1333, %v1501
  %v1519 = vmax.f32 %v1336, %v1504
  %v1520 = vmax.f32 %v1339, %v1507
  %v1521 = vmax.f32 %v1342, %v1510
  %v1522 = vmax.f32 %v1345, %v1513
  %v1523 = vld [vmem:[%s6] sm:$0x1]
  %v1525 = vperm.slane %v1523, 0
  %v1527 = vadd.f32 %v1515, %v1525
  %v1528 = vadd.f32 %v1516, %v1525
  %v1529 = vadd.f32 %v1517, %v1525
  %v1530 = vadd.f32 %v1518, %v1525
  %v1531 = vadd.f32 %v1519, %v1525
  %v1532 = vadd.f32 %v1520, %v1525
  %v1533 = vadd.f32 %v1521, %v1525
  %v1534 = vadd.f32 %v1522, %v1525
  %v1535 = vmax.f32 %v1527, %v1528
  %v1536 = vmax.f32 %v1529, %v1530
  %v1537 = vmax.f32 %v1531, %v1532
  %v1538 = vmax.f32 %v1533, %v1534
  %v1539 = vmax.f32 %v1535, 0.0
  %v1540 = vmax.f32 %v1536, 0.0
  %v1541 = vmax.f32 %v1537, 0.0
  %v1542 = vmax.f32 %v1538, 0.0
  %1544 = vrot.lane.b32.xlu0 %v1540, 64
  %v1545 = vpop.permute.xlu0 %1544
  %1548 = vrot.lane.b32.xlu0 %v1542, 64
  %v1549 = vpop.permute.xlu0 %1548
  %vm1551 = vcmask 523264
  %v1552 = vsel %vm1551, %v1539, %v1545
  %v1553 = vsel %vm1551, %v1541, %v1549
  %v1554 = vld [vmem:[%s7] sm:$0xff]
  %v1555 = vld [vmem:[%s7 + $0x8] sm:$0xff]
  %v1556 = vld [vmem:[%s7 + $0x10] sm:$0xff]
  %v1557 = vld [vmem:[%s7 + $0x18] sm:$0xff]
  %v1558 = vld [vmem:[%s7 + $0x20] sm:$0xff]
  %v1559 = vld [vmem:[%s7 + $0x28] sm:$0xff]
  %v1560 = vld [vmem:[%s7 + $0x30] sm:$0xff]
  %v1561 = vld [vmem:[%s7 + $0x38] sm:$0xff]
  %v1562 = vld [vmem:[%s7 + $0x40] sm:$0xff]
  %v1563 = vld [vmem:[%s7 + $0x48] sm:$0xff]
  %v1564 = vld [vmem:[%s7 + $0x50] sm:$0xff]
  %v1565 = vld [vmem:[%s7 + $0x58] sm:$0xff]
  %v1566 = vld [vmem:[%s7 + $0x60] sm:$0xff]
  %v1567 = vld [vmem:[%s7 + $0x68] sm:$0xff]
  %v1568 = vld [vmem:[%s7 + $0x70] sm:$0xff]
  %v1569 = vld [vmem:[%s7 + $0x78] sm:$0xff]
  %v1570 = vld [vmem:[%s7 + $0x80] sm:$0xff]
  %v1571 = vld [vmem:[%s7 + $0x88] sm:$0xff]
  %v1572 = vld [vmem:[%s7 + $0x90] sm:$0xff]
  %v1573 = vld [vmem:[%s7 + $0x98] sm:$0xff]
  %v1574 = vld [vmem:[%s7 + $0xa0] sm:$0xff]
  %v1575 = vld [vmem:[%s7 + $0xa8] sm:$0xff]
  %v1576 = vld [vmem:[%s7 + $0xb0] sm:$0xff]
  %v1577 = vld [vmem:[%s7 + $0xb8] sm:$0xff]
  %v1578 = vld [vmem:[%s7 + $0xc0] sm:$0xff]
  %v1579 = vld [vmem:[%s7 + $0xc8] sm:$0xff]
  %v1580 = vld [vmem:[%s7 + $0xd0] sm:$0xff]
  %v1581 = vld [vmem:[%s7 + $0xd8] sm:$0xff]
  %v1582 = vld [vmem:[%s7 + $0xe0] sm:$0xff]
  %v1583 = vld [vmem:[%s7 + $0xe8] sm:$0xff]
  %v1584 = vld [vmem:[%s7 + $0xf0] sm:$0xff]
  %v1585 = vld [vmem:[%s7 + $0xf8] sm:$0xff]
  %v1586 = vld [vmem:[%s8] sm:$0x1]
  %v1588 = vperm.slane %v1586, 0
  %1590 = vmatpush.msra.mxu0 %v1569
  %1591 = vmatpush.msra.mxu0 %v1568
  %1592 = vmatpush.msra.mxu0 %v1567
  %1593 = vmatpush.msra.mxu0 %v1566
  %1594 = vmatpush.msra.mxu0 %v1565
  %1595 = vmatpush.msra.mxu0 %v1564
  %1596 = vmatpush.msra.mxu0 %v1563
  %1597 = vmatpush.msra.mxu0 %v1562
  %1598 = vmatpush.msra.mxu0 %v1561
  %1599 = vmatpush.msra.mxu0 %v1560
  %1600 = vmatpush.msra.mxu0 %v1559
  %1601 = vmatpush.msra.mxu0 %v1558
  %1602 = vmatpush.msra.mxu0 %v1557
  %1603 = vmatpush.msra.mxu0 %v1556
  %1604 = vmatpush.msra.mxu0 %v1555
  %1605 = vmatpush.msra.mxu0 %v1554
  %1606 = vmatmul.f32.gmra.mxu0 %v1552
  %v1607 = vpop.f32.mrf.mxu0
  %v1608 = vadd.f32 %v1588, %v1607
  %1609 = vdwg.mxu0
  %1610 = vmatpush.msra.mxu0 %v1585
  %1611 = vmatpush.msra.mxu0 %v1584
  %1612 = vmatpush.msra.mxu0 %v1583
  %1613 = vmatpush.msra.mxu0 %v1582
  %1614 = vmatpush.msra.mxu0 %v1581
  %1615 = vmatpush.msra.mxu0 %v1580
  %1616 = vmatpush.msra.mxu0 %v1579
  %1617 = vmatpush.msra.mxu0 %v1578
  %1618 = vmatpush.msra.mxu0 %v1577
  %1619 = vmatpush.msra.mxu0 %v1576
  %1620 = vmatpush.msra.mxu0 %v1575
  %1621 = vmatpush.msra.mxu0 %v1574
  %1622 = vmatpush.msra.mxu0 %v1573
  %1623 = vmatpush.msra.mxu0 %v1572
  %1624 = vmatpush.msra.mxu0 %v1571
  %1625 = vmatpush.msra.mxu0 %v1570
  %1626 = vmatmul.f32.gmra.mxu0 %v1553
  %v1627 = vpop.f32.mrf.mxu0
  %v1628 = vadd.f32 %v1608, %v1627
  %1629 = vdwg.mxu0
  %v1630 = vmax.f32 %v1628, 0.0
  %v1631 = vld [vmem:[%s9] sm:$0xff]
  %v1632 = vld [vmem:[%s9 + $0x8] sm:$0xff]
  %v1633 = vld [vmem:[%s9 + $0x10] sm:$0xff]
  %v1634 = vld [vmem:[%s9 + $0x18] sm:$0xff]
  %v1635 = vld [vmem:[%s9 + $0x20] sm:$0xff]
  %v1636 = vld [vmem:[%s9 + $0x28] sm:$0xff]
  %v1637 = vld [vmem:[%s9 + $0x30] sm:$0xff]
  %v1638 = vld [vmem:[%s9 + $0x38] sm:$0xff]
  %v1639 = vld [vmem:[%s9 + $0x40] sm:$0xff]
  %v1640 = vld [vmem:[%s9 + $0x48] sm:$0xff]
  %v1641 = vld [vmem:[%s9 + $0x50] sm:$0xff]
  %v1642 = vld [vmem:[%s9 + $0x58] sm:$0xff]
  %v1643 = vld [vmem:[%s9 + $0x60] sm:$0xff]
  %v1644 = vld [vmem:[%s9 + $0x68] sm:$0xff]
  %v1645 = vld [vmem:[%s9 + $0x70] sm:$0xff]
  %v1646 = vld [vmem:[%s9 + $0x78] sm:$0xff]
  %v1647 = vld [vmem:[%s10] sm:$0x1]
  %v1649 = vperm.slane %v1647, 0
  %1651 = vmatpush.msra.mxu0 %v1646
  %1652 = vmatpush.msra.mxu0 %v1645
  %1653 = vmatpush.msra.mxu0 %v1644
  %1654 = vmatpush.msra.mxu0 %v1643
  %1655 = vmatpush.msra.mxu0 %v1642
  %1656 = vmatpush.msra.mxu0 %v1641
  %1657 = vmatpush.msra.mxu0 %v1640
  %1658 = vmatpush.msra.mxu0 %v1639
  %1659 = vmatpush.msra.mxu0 %v1638
  %1660 = vmatpush.msra.mxu0 %v1637
  %1661 = vmatpush.msra.mxu0 %v1636
  %1662 = vmatpush.msra.mxu0 %v1635
  %1663 = vmatpush.msra.mxu0 %v1634
  %1664 = vmatpush.msra.mxu0 %v1633
  %1665 = vmatpush.msra.mxu0 %v1632
  %1666 = vmatpush.msra.mxu0 %v1631
  %1667 = vmatmul.f32.gmra.mxu0 %v1630
  %v1668 = vpop.f32.mrf.mxu0
  %v1669 = vadd.f32 %v1649, %v1668
  %1670 = vdwg.mxu0
  %v1671 = vmax.f32 %v1669, 0.0
  %v1672 = vld [vmem:[%s11] sm:$0xff]
  %v1673 = vld [vmem:[%s11 + $0x8] sm:$0xff]
  %v1674 = vld [vmem:[%s11 + $0x10] sm:$0xff]
  %v1675 = vld [vmem:[%s11 + $0x18] sm:$0xff]
  %v1676 = vld [vmem:[%s11 + $0x20] sm:$0xff]
  %v1677 = vld [vmem:[%s11 + $0x28] sm:$0xff]
  %v1678 = vld [vmem:[%s11 + $0x30] sm:$0xff]
  %v1679 = vld [vmem:[%s11 + $0x38] sm:$0xff]
  %v1680 = vld [vmem:[%s11 + $0x40] sm:$0xff]
  %v1681 = vld [vmem:[%s11 + $0x48] sm:$0xff]
  %v1682 = vld [vmem:[%s11 + $0x50] sm:$0xff]
  %v1683 = vld [vmem:[%s11 + $0x58] sm:$0xff]
  %v1684 = vld [vmem:[%s11 + $0x60] sm:$0xff]
  %v1685 = vld [vmem:[%s11 + $0x68] sm:$0xff]
  %v1686 = vld [vmem:[%s11 + $0x70] sm:$0xff]
  %v1687 = vld [vmem:[%s11 + $0x78] sm:$0xff]
  %v1688 = vld [vmem:[%s12] sm:$0x1]
  %v1690 = vperm.slane %v1688, 0
  %1692 = vmatpush.msra.mxu0 %v1687
  %1693 = vmatpush.msra.mxu0 %v1686
  %1694 = vmatpush.msra.mxu0 %v1685
  %1695 = vmatpush.msra.mxu0 %v1684
  %1696 = vmatpush.msra.mxu0 %v1683
  %1697 = vmatpush.msra.mxu0 %v1682
  %1698 = vmatpush.msra.mxu0 %v1681
  %1699 = vmatpush.msra.mxu0 %v1680
  %1700 = vmatpush.msra.mxu0 %v1679
  %1701 = vmatpush.msra.mxu0 %v1678
  %1702 = vmatpush.msra.mxu0 %v1677
  %1703 = vmatpush.msra.mxu0 %v1676
  %1704 = vmatpush.msra.mxu0 %v1675
  %1705 = vmatpush.msra.mxu0 %v1674
  %1706 = vmatpush.msra.mxu0 %v1673
  %1707 = vmatpush.msra.mxu0 %v1672
  %1708 = vmatmul.f32.gmra.mxu0 %v1671
  %v1709 = vpop.f32.mrf.mxu0
  %v1710 = vadd.f32 %v1690, %v1709
  %1711 = vdwg.mxu0
  %vm1712 = vcmask 80896
  %1713 = vst.msk [vmem:[%s13] sm:$0xff] %vm1712, %v1710
  // Predicated region
  $region54: #{garment_classifier_forward.1} parent=0 // pred_check
    _
  $region55: #{garment_classifier_forward.1} parent=0 // pred_check_branch
    %1715 = sbr.rel (0) target = $region57
  $region56: #{garment_classifier_forward.1} parent=0 // pred_region
    _
  $region57: #{garment_classifier_forward.1} parent=0 // pred_fallthru
    _
  // Predicated region
  $region58: #{garment_classifier_forward.1} parent=0 // pred_check
    _
  $region59: #{garment_classifier_forward.1} parent=0 // pred_check_branch
    %1717 = sbr.rel (0) target = $region61
  $region60: #{garment_classifier_forward.1} parent=0 // pred_region
    _
  $region61: #{garment_classifier_forward.1} parent=0 // pred_fallthru
    _

</llo_original>
